<compile_context>
chip_gen: v7x
topology: tpu7x:2x2x1
jax: 0.10.0
libtpu: 0.0.40
codegen_flags: <defaults>
</compile_context>

<pallas_src>
import functools

import jax
import jax.numpy as jnp
import numpy as np
from jax.experimental import pallas as pl
from jax.experimental.pallas import tpu as pltpu

_EPS = 1e-12            # F.normalize eps
_IDX_SENTINEL = 2 ** 30  # tie-break sentinel (requires Q < 2**30)


def _make_nn_kernel(tile_q, chunk_q):
    """Builds the per-grid-step kernel with static tile/chunk sizes baked in."""

    def kernel(xl2t_ref, q_ref, scale_ref, maxval_out, maxidx_out,
               maxval_ref, maxidx_ref):
        # xl2t_ref  : (E, B)        normalized x, transposed (resident)
        # q_ref     : (tile_q, E)   bf16 queue tile
        # scale_ref : (tile_q, 1)   f32 cached 1/||queue row||
        # maxval_out: (1, 1, B)     per-split best similarity (last step)
        # maxidx_out: (1, 1, B)     per-split best index       (last step)
        # maxval_ref/maxidx_ref : (1, B) VMEM running max / argmax
        s_id = pl.program_id(0)                 # queue split       ("parallel")
        t = pl.program_id(1)                    # tile within split ("arbitrary")
        n_t = pl.num_programs(1)

        @pl.when(t == 0)
        def _():
            maxval_ref[...] = jnp.full(maxval_ref.shape, -jnp.inf, jnp.float32)
            maxidx_ref[...] = jnp.zeros(maxidx_ref.shape, jnp.int32)

        xl2t = xl2t_ref[...]                                     # (E, B)
        tile_base = (s_id * n_t + t) * tile_q                    # global row base

        # Static inner chunking bounds the lane-sparse (chunk, B) temporaries
        # even when tile_q is large (B << 128 lanes).  <= 9 chunks, all static.
        for off in range(0, tile_q, chunk_q):
            size = min(chunk_q, tile_q - off)
            q = q_ref[off:off + size, :]                         # (size, E)
            scale = scale_ref[off:off + size, :]                 # (size, 1)

            # Raw dot products on the MXU, then scale by the cached per-row
            # inverse queue norm (no XLU cross-lane reduce in the kernel).
            s_raw = jnp.dot(q, xl2t, preferred_element_type=jnp.float32)
            s = s_raw * scale                                    # (size, B)

            # Chunk-local max and first-argmax over the queue (sublane) axis.
            local_max = jnp.max(s, axis=0, keepdims=True)        # (1, B)
            row = jax.lax.broadcasted_iota(jnp.int32, s.shape, 0)
            masked = jnp.where(s == local_max, row, jnp.int32(_IDX_SENTINEL))
            local_arg = (jnp.min(masked, axis=0, keepdims=True)
                         + (tile_base + off))                    # (1, B)

            # Online update; strict '>' keeps the earliest index on ties,
            # matching torch.argmax first-occurrence semantics.
            better = local_max > maxval_ref[...]
            maxidx_ref[...] = jnp.where(better, local_arg, maxidx_ref[...])
            maxval_ref[...] = jnp.where(better, local_max, maxval_ref[...])

        @pl.when(t == n_t - 1)
        def _():
            maxval_out[0] = maxval_ref[...]
            maxidx_out[0] = maxidx_ref[...]

    return kernel


def _round_up(v, m):
    return -(-v // m) * m


def _nearest_neighbor_idx(xl2t, q_scan, scale, n_split, steps, tile_q, chunk_q):
    E, B = xl2t.shape
    kernel = _make_nn_kernel(tile_q, chunk_q)

    maxval, maxidx = pl.pallas_call(
        kernel,
        out_shape=(
            jax.ShapeDtypeStruct((n_split, 1, B), jnp.float32),
            jax.ShapeDtypeStruct((n_split, 1, B), jnp.int32),
        ),
        grid_spec=pltpu.PrefetchScalarGridSpec(
            num_scalar_prefetch=0,
            grid=(n_split, steps),
            in_specs=[
                pl.BlockSpec((E, B), lambda s, t: (0, 0)),                   # x (resident)
                pl.BlockSpec((tile_q, E), lambda s, t: (s * steps + t, 0)),  # queue tile
                pl.BlockSpec((tile_q, 1), lambda s, t: (s * steps + t, 0)),  # 1/||row||
            ],
            out_specs=[
                pl.BlockSpec((1, 1, B), lambda s, t: (s, 0, 0)),  # best value
                pl.BlockSpec((1, 1, B), lambda s, t: (s, 0, 0)),  # best index
            ],
            scratch_shapes=[
                pltpu.VMEM((1, B), jnp.float32),  # running max similarity
                pltpu.VMEM((1, B), jnp.int32),    # running argmax
            ],
        ),
        compiler_params=pltpu.CompilerParams(
            dimension_semantics=("parallel", "arbitrary"),
            vmem_limit_bytes=32 * 1024 * 1024,
        ),
    )(xl2t, q_scan, scale)

    if n_split == 1:
        return maxidx[0, 0]

    # Cross-split merge (tiny JAX glue).  argmax over splits keeps the lowest
    # global index on exact ties because split 0 owns the lowest row range.
    vals = maxval[:, 0, :]                       # (n_split, B)
    idxs = maxidx[:, 0, :]                       # (n_split, B)
    best_split = jnp.argmax(vals, axis=0)        # (B,)
    return jnp.take_along_axis(idxs, best_split[None, :], axis=0)[0]


@functools.partial(
    jax.jit,
    static_argnames=("normalized", "n_split", "max_tile_q", "chunk_q",
                     "use_bf16_scan"))
def queue_support_set_forward(x, queue, normalized=True, n_split=1,
                              max_tile_q=8192, chunk_q=1024,
                              use_bf16_scan=True):
    """Pallas implementation of QueueSupportSet.forward."""
    B, E = x.shape
    Q, E2 = queue.shape
    assert E == E2
    assert Q < _IDX_SENTINEL

    scan_dtype = jnp.bfloat16 if use_bf16_scan else jnp.float32

    # ---- Tiny XLA-side glue --------------------------------------------------
    x32 = x.astype(jnp.float32)
    xn = jnp.sqrt(jnp.sum(x32 * x32, axis=1, keepdims=True))
    xl2 = x32 / jnp.maximum(xn, _EPS)              # == F.normalize(x, dim=1)
    xl2t = xl2.T.astype(scan_dtype)                # (E, B), MXU-ready

    q32 = queue.astype(jnp.float32)
    qn = jnp.sqrt(jnp.sum(q32 * q32, axis=1, keepdims=True))       # (Q, 1)
    inv_qn = (1.0 / jnp.maximum(qn, _EPS)).astype(jnp.float32)     # cached norms
    q_scan = queue.astype(scan_dtype)              # bf16 shadow of the queue

    # ---- Static tiling -------------------------------------------------------
    n_split = max(1, int(n_split))
    per_split = -(-Q // n_split)
    steps = max(1, -(-per_split // max_tile_q))
    tile_q = _round_up(-(-per_split // steps), 8)
    chunk_q = max(8, min((chunk_q // 8) * 8, tile_q))
    q_padded = n_split * steps * tile_q
    pad = q_padded - Q
    if pad:
        # Wrap-pad with real rows: a duplicate can never displace the earlier
        # equal hit (strict '>' update), so first-occurrence argmax holds and
        # no extra in-kernel masking is needed.
        wrap = jnp.arange(pad, dtype=jnp.int32) % Q
        q_scan = jnp.concatenate([q_scan, jnp.take(q_scan, wrap, axis=0)], 0)
        inv_qn = jnp.concatenate([inv_qn, jnp.take(inv_qn, wrap, axis=0)], 0)

    nn_idx = _nearest_neighbor_idx(xl2t, q_scan, inv_qn,
                                   n_split, steps, tile_q, chunk_q)

    # ---- Gather + optional renormalization from the full-precision queue ----
    rows = jnp.take(q32, nn_idx, axis=0)           # (B, E) f32
    if normalized:
        rn = jnp.sqrt(jnp.sum(rows * rows, axis=1, keepdims=True))
        rows = rows / jnp.maximum(rn, _EPS)
    return rows


def _reference_forward(x, queue, normalized=True):
    q_l2 = queue / jnp.maximum(
        jnp.linalg.norm(queue, axis=1, keepdims=True), _EPS)
    x_l2 = x / jnp.maximum(jnp.linalg.norm(x, axis=1, keepdims=True), _EPS)
    sims = x_l2 @ q_l2.T
    nn_idx = jnp.argmax(sims, axis=1)
    return (q_l2 if normalized else queue)[nn_idx]


if __name__ == "__main__":
    key = jax.random.PRNGKey(0)
    k_queue, k_perm, k_n1, k_n2, k_rand = jax.random.split(key, 5)

    embed_size = 128
    queue_size = 512
    batch = 8

    # register_buffer('queue', torch.randn(queue_size, embed_size)) analogue.
    queue = jax.random.normal(k_queue, (queue_size, embed_size),
                              dtype=jnp.float32)

    # Planted nearest neighbours: each query is a scaled queue row plus small
    # noise, so the argmax gap is huge and robust to bf16 scan quantization.
    target = jax.random.permutation(k_perm, queue_size)[:batch]
    x = (0.7 * queue[target]
         + 0.05 * jax.random.normal(k_n1, (batch, embed_size), jnp.float32))

    out = jax.block_until_ready(
        queue_support_set_forward(x, queue, normalized=True))
    np.testing.assert_allclose(
        np.asarray(out), np.asarray(_reference_forward(x, queue, True)),
        rtol=1e-5, atol=1e-5)

    out_raw = jax.block_until_ready(
        queue_support_set_forward(x, queue, normalized=False))
    np.testing.assert_allclose(
        np.asarray(out_raw), np.asarray(_reference_forward(x, queue, False)),
        rtol=1e-5, atol=1e-5)

    # Ragged queue size exercises the wrap-padding path (500 -> 504 rows).
    queue_r = queue[:500]
    x_r = (0.7 * queue_r[target % 500]
           + 0.05 * jax.random.normal(k_n2, (batch, embed_size), jnp.float32))
    out_r = jax.block_until_ready(
        queue_support_set_forward(x_r, queue_r, normalized=True))
    np.testing.assert_allclose(
        np.asarray(out_r), np.asarray(_reference_forward(x_r, queue_r, True)),
        rtol=1e-5, atol=1e-5)

    # Unstructured queries: the bf16 scan must return a (near-)optimal row.
    x_rand = jax.random.normal(k_rand, (batch, embed_size), jnp.float32)
    out_rand = jax.block_until_ready(
        queue_support_set_forward(x_rand, queue, normalized=True))
    x_l2_np = np.asarray(x_rand)
    x_l2_np = x_l2_np / np.linalg.norm(x_l2_np, axis=1, keepdims=True)
    q_l2_np = np.asarray(queue)
    q_l2_np = q_l2_np / np.linalg.norm(q_l2_np, axis=1, keepdims=True)
    best = (x_l2_np @ q_l2_np.T).max(axis=1)
    achieved = np.sum(x_l2_np * np.asarray(out_rand), axis=1)
    assert np.all(achieved >= best - 1e-2), (achieved, best)

    print("KERNEL_OK")
</pallas_src>

<mosaic_0001>
module attributes {stable_mosaic.version = 11 : i64} {
  func.func @kernel(%arg0: i32, %arg1: i32, %arg2: memref<128x8xbf16, #tpu.memory_space<vmem>>, %arg3: memref<512x128xbf16, #tpu.memory_space<vmem>>, %arg4: memref<512x1xf32, #tpu.memory_space<vmem>>, %arg5: memref<1x1x8xf32, #tpu.memory_space<vmem>>, %arg6: memref<1x1x8xi32, #tpu.memory_space<vmem>>, %arg7: memref<1x8xf32, #tpu.memory_space<vmem>>, %arg8: memref<1x8xi32, #tpu.memory_space<vmem>>) attributes {dimension_semantics = [#tpu.dimension_semantics<parallel>, #tpu.dimension_semantics<arbitrary>], iteration_bounds = array<i64: 1, 1>, scalar_prefetch = 0 : i64, scratch_operands = 2 : i64, tpu.core_type = #tpu.core_type<tc>, window_params = [{pipeline_mode = #tpu.pipeline_mode<synchronous>, transform_indices = @transform_0, window_bounds = array<i64: 128, 8>}, {transform_indices = @transform_1, window_bounds = array<i64: 512, 128>}, {transform_indices = @transform_2, window_bounds = array<i64: 512, 1>}, {transform_indices = @transform_3, window_bounds = array<i64: 1, 1, 8>}, {transform_indices = @transform_4, window_bounds = array<i64: 1, 1, 8>}]} {
    %c0_i32 = arith.constant 0 : i32
    %0 = arith.cmpi eq, %arg1, %c0_i32 : i32
    %1 = arith.extui %0 : i1 to i32
    %c0_i32_0 = arith.constant 0 : i32
    %2 = arith.cmpi ne, %1, %c0_i32_0 : i32
    scf.if %2 {
      %cst_21 = arith.constant 0xFF800000 : f32
      %35 = vector.broadcast %cst_21 : f32 to vector<1x8xf32>
      %c0_22 = arith.constant 0 : index
      %c0_23 = arith.constant 0 : index
      %36 = vector.load %arg7[%c0_22, %c0_23] : memref<1x8xf32, #tpu.memory_space<vmem>>, vector<1x8xf32>
      tpu.vector_store %arg7[%c0_22, %c0_23], %35 {strides = array<i32>} : memref<1x8xf32, #tpu.memory_space<vmem>>, vector<1x8xf32>,
      %c0_i32_24 = arith.constant 0 : i32
      %37 = vector.broadcast %c0_i32_24 : i32 to vector<1x8xi32>
      %c0_25 = arith.constant 0 : index
      %c0_26 = arith.constant 0 : index
      %38 = vector.load %arg8[%c0_25, %c0_26] : memref<1x8xi32, #tpu.memory_space<vmem>>, vector<1x8xi32>
      tpu.vector_store %arg8[%c0_25, %c0_26], %37 {strides = array<i32>} : memref<1x8xi32, #tpu.memory_space<vmem>>, vector<1x8xi32>,
    } else {
    }
    %c0 = arith.constant 0 : index
    %c0_1 = arith.constant 0 : index
    %3 = vector.load %arg2[%c0, %c0_1] : memref<128x8xbf16, #tpu.memory_space<vmem>>, vector<128x8xbf16>
    %c1_i32 = arith.constant 1 : i32
    %4 = arith.muli %arg0, %c1_i32 : i32
    %5 = arith.addi %4, %arg1 : i32
    %c512_i32 = arith.constant 512 : i32
    %6 = arith.muli %5, %c512_i32 : i32
    %c0_2 = arith.constant 0 : index
    %c0_3 = arith.constant 0 : index
    %7 = vector.load %arg3[%c0_2, %c0_3] : memref<512x128xbf16, #tpu.memory_space<vmem>>, vector<512x128xbf16>
    %c0_4 = arith.constant 0 : index
    %c0_5 = arith.constant 0 : index
    %8 = vector.load %arg4[%c0_4, %c0_5] : memref<512x1xf32, #tpu.memory_space<vmem>>, vector<512x1xf32>
    %cst = arith.constant dense<0.000000e+00> : vector<512x8xf32>
    %9 = tpu.matmul %7, %3, %cst {dimension_numbers = #tpu.dot_dimension_numbers<[1], [0], [0], [1], [0, 0, 1, 1], [], []>} : vector<512x128xbf16>, vector<128x8xbf16>, vector<512x8xf32> -> vector<512x8xf32>
    %10 = vector.broadcast %8 : vector<512x1xf32> to vector<512x8xf32>
    %11 = arith.mulf %9, %10 : vector<512x8xf32>
    %cst_6 = arith.constant dense<0xFF800000> : vector<8xf32>
    %12 = vector.multi_reduction <maximumf>, %11, %cst_6 [0] : vector<512x8xf32> to vector<8xf32>
    %13 = vector.shape_cast %12 : vector<8xf32> to vector<1x8xf32>
    %14 = tpu.iota {dimensions = array<i32: 0>} : vector<512x8xi32>
    %15 = vector.broadcast %13 : vector<1x8xf32> to vector<512x8xf32>
    %16 = arith.cmpf oeq, %11, %15 : vector<512x8xf32>
    %c1073741824_i32 = arith.constant 1073741824 : i32
    %17 = vector.broadcast %c1073741824_i32 : i32 to vector<512x8xi32>
    %18 = arith.select %16, %14, %17 : vector<512x8xi1>, vector<512x8xi32>
    %cst_7 = arith.constant dense<2147483647> : vector<8xi32>
    %19 = vector.multi_reduction <minsi>, %18, %cst_7 [0] : vector<512x8xi32> to vector<8xi32>
    %20 = vector.shape_cast %19 : vector<8xi32> to vector<1x8xi32>
    %c0_i32_8 = arith.constant 0 : i32
    %21 = arith.addi %6, %c0_i32_8 : i32
    %22 = vector.broadcast %21 : i32 to vector<1x8xi32>
    %23 = arith.addi %20, %22 : vector<1x8xi32>
    %c0_9 = arith.constant 0 : index
    %c0_10 = arith.constant 0 : index
    %24 = vector.load %arg7[%c0_9, %c0_10] : memref<1x8xf32, #tpu.memory_space<vmem>>, vector<1x8xf32>
    %25 = arith.cmpf ogt, %13, %24 : vector<1x8xf32>
    %c0_11 = arith.constant 0 : index
    %c0_12 = arith.constant 0 : index
    %26 = vector.load %arg8[%c0_11, %c0_12] : memref<1x8xi32, #tpu.memory_space<vmem>>, vector<1x8xi32>
    %27 = arith.select %25, %23, %26 : vector<1x8xi1>, vector<1x8xi32>
    %c0_13 = arith.constant 0 : index
    %c0_14 = arith.constant 0 : index
    %28 = vector.load %arg8[%c0_13, %c0_14] : memref<1x8xi32, #tpu.memory_space<vmem>>, vector<1x8xi32>
    tpu.vector_store %arg8[%c0_13, %c0_14], %27 {strides = array<i32>} : memref<1x8xi32, #tpu.memory_space<vmem>>, vector<1x8xi32>,
    %c0_15 = arith.constant 0 : index
    %c0_16 = arith.constant 0 : index
    %29 = vector.load %arg7[%c0_15, %c0_16] : memref<1x8xf32, #tpu.memory_space<vmem>>, vector<1x8xf32>
    %30 = arith.select %25, %13, %29 : vector<1x8xi1>, vector<1x8xf32>
    %c0_17 = arith.constant 0 : index
    %c0_18 = arith.constant 0 : index
    %31 = vector.load %arg7[%c0_17, %c0_18] : memref<1x8xf32, #tpu.memory_space<vmem>>, vector<1x8xf32>
    tpu.vector_store %arg7[%c0_17, %c0_18], %30 {strides = array<i32>} : memref<1x8xf32, #tpu.memory_space<vmem>>, vector<1x8xf32>,
    %c0_i32_19 = arith.constant 0 : i32
    %32 = arith.cmpi eq, %arg1, %c0_i32_19 : i32
    %33 = arith.extui %32 : i1 to i32
    %c0_i32_20 = arith.constant 0 : i32
    %34 = arith.cmpi ne, %33, %c0_i32_20 : i32
    scf.if %34 {
      %c0_21 = arith.constant 0 : index
      %c0_22 = arith.constant 0 : index
      %35 = vector.load %arg7[%c0_21, %c0_22] : memref<1x8xf32, #tpu.memory_space<vmem>>, vector<1x8xf32>
      %c0_23 = arith.constant 0 : index
      %c0_24 = arith.constant 0 : index
      %c0_25 = arith.constant 0 : index
      %36 = vector.load %arg5[%c0_23, %c0_24, %c0_25] : memref<1x1x8xf32, #tpu.memory_space<vmem>>, vector<1x1x8xf32>
      %37 = vector.shape_cast %36 : vector<1x1x8xf32> to vector<1x8xf32>
      %38 = vector.shape_cast %35 : vector<1x8xf32> to vector<1x1x8xf32>
      tpu.vector_store %arg5[%c0_23, %c0_24, %c0_25], %38 {strides = array<i32>} : memref<1x1x8xf32, #tpu.memory_space<vmem>>, vector<1x1x8xf32>,
      %c0_26 = arith.constant 0 : index
      %c0_27 = arith.constant 0 : index
      %39 = vector.load %arg8[%c0_26, %c0_27] : memref<1x8xi32, #tpu.memory_space<vmem>>, vector<1x8xi32>
      %c0_28 = arith.constant 0 : index
      %c0_29 = arith.constant 0 : index
      %c0_30 = arith.constant 0 : index
      %40 = vector.load %arg6[%c0_28, %c0_29, %c0_30] : memref<1x1x8xi32, #tpu.memory_space<vmem>>, vector<1x1x8xi32>
      %41 = vector.shape_cast %40 : vector<1x1x8xi32> to vector<1x8xi32>
      %42 = vector.shape_cast %39 : vector<1x8xi32> to vector<1x1x8xi32>
      tpu.vector_store %arg6[%c0_28, %c0_29, %c0_30], %42 {strides = array<i32>} : memref<1x1x8xi32, #tpu.memory_space<vmem>>, vector<1x1x8xi32>,
    } else {
    }
    return
  }
  func.func @transform_0(%arg0: i32, %arg1: i32) -> (i32, i32) {
    %c0_i32 = arith.constant 0 : i32
    %c0_i32_0 = arith.constant 0 : i32
    %c0_i32_1 = arith.constant 0 : i32
    return %c0_i32, %c0_i32_0 : i32, i32
  }
  func.func @transform_1(%arg0: i32, %arg1: i32) -> (i32, i32) {
    %c1_i32 = arith.constant 1 : i32
    %0 = arith.muli %arg0, %c1_i32 : i32
    %1 = arith.addi %0, %arg1 : i32
    %c0_i32 = arith.constant 0 : i32
    %c0_i32_0 = arith.constant 0 : i32
    return %1, %c0_i32 : i32, i32
  }
  func.func @transform_2(%arg0: i32, %arg1: i32) -> (i32, i32) {
    %c1_i32 = arith.constant 1 : i32
    %0 = arith.muli %arg0, %c1_i32 : i32
    %1 = arith.addi %0, %arg1 : i32
    %c0_i32 = arith.constant 0 : i32
    %c0_i32_0 = arith.constant 0 : i32
    return %1, %c0_i32 : i32, i32
  }
  func.func @transform_3(%arg0: i32, %arg1: i32) -> (i32, i32, i32) {
    %c0_i32 = arith.constant 0 : i32
    %c0_i32_0 = arith.constant 0 : i32
    %c0_i32_1 = arith.constant 0 : i32
    return %arg0, %c0_i32, %c0_i32_0 : i32, i32, i32
  }
  func.func @transform_4(%arg0: i32, %arg1: i32) -> (i32, i32, i32) {
    %c0_i32 = arith.constant 0 : i32
    %c0_i32_0 = arith.constant 0 : i32
    %c0_i32_1 = arith.constant 0 : i32
    return %arg0, %c0_i32, %c0_i32_0 : i32, i32, i32
  }
}

</mosaic_0001>

<llo_original>
// kernel: queue_support_set_forward.1
$region0: #{queue_support_set_forward.1}
  #allocation0 [shape = 'u32[]', space=smem, size = 0x4, offset = 0x4, fixed_abs, tag = 'smem constant byte address 0x4 - core index']
  #allocation1 [shape = 'u32[144,128]{1,0:T(1,128)}', space=vmem, size = 0x12000, scoped, tag = 'internal scratch']
  #allocation2 [shape = 'f32[1,8]{1,0:T(1,128)}', space=vmem, size = 0x200, scoped, tag = 'scratch operand']
  #allocation3 [shape = 's32[1,8]{1,0:T(1,128)}', space=vmem, size = 0x200, scoped, tag = 'scratch operand']
  %s0 = inlined_call_operand.vmem [shape: bf16[128,8], index: 0, kind: input, shape index: {}]
  %s1 = inlined_call_operand.vmem [shape: bf16[512,128], index: 1, kind: input, shape index: {}]
  %s2 = inlined_call_operand.vmem [shape: f32[512,1], index: 2, kind: input, shape index: {}]
  %s3 = inlined_call_operand.hbm [shape: f32[1,1,8], index: 3, kind: output, shape index: {0}]
  %s4 = inlined_call_operand.vmem [shape: s32[1,1,8], index: 4, kind: output, shape index: {1}]
  %5 = xla_tuple %s3, %s4
  %s6 = sld [smem:[#allocation0]]
  $region38: #{queue_support_set_forward.1} parent=0
    _
  %s8 = ssub.s32 1, %s6
  %s9 = scalar_select 0, %s8, %s6
  $region1: #{queue_support_set_forward.1} parent=0
    #allocation4 [shape = 'u8[512]{0}', space=vmem, size = 0x400, scoped, tag = 'output window, operand 0, single buffered']
    #allocation5 [shape = 's32[1]{0}', space=sflag, size = 0x4, scoped, tag = 'scoped memory for queue_support_set_forward.1']
    %10 = vsyncpa [#allocation5], 0
    // Predicated region
    $region2: #{queue_support_set_forward.1} parent=1 // pred_check
      _
    $region3: #{queue_support_set_forward.1} parent=1 // pred_check_branch
      %12 = sbr.rel (0) target = $region5
    $region4: #{queue_support_set_forward.1} parent=1 // pred_region
      _
    $region5: #{queue_support_set_forward.1} parent=1 // pred_fallthru
      _
    // Predicated region
    $region6: #{queue_support_set_forward.1} parent=1 // pred_check
      _
    $region7: #{queue_support_set_forward.1} parent=1 // pred_check_branch
      %14 = sbr.rel (0) target = $region9
    $region8: #{queue_support_set_forward.1} parent=1 // pred_region
      %s15 = sadd.s32 0, 0
      %s16 = smul.u32 64, %s15
      %p17 = scmp.lt.s32.totalorder %s16, 63
      %s18 = scalar_select %p17, %s16, 63
      %s19 = smul.addr %s18, 4
      %s20 = scalar_lea.vmem %s1, %s19
      %s21 = sadd.s32 0, 0
      %s22 = smul.u32 64, %s21
    $region9: #{queue_support_set_forward.1} parent=1 // pred_fallthru
      _
    // Predicated region
    $region10: #{queue_support_set_forward.1} parent=1 // pred_check
      _
    $region11: #{queue_support_set_forward.1} parent=1 // pred_check_branch
      %24 = sbr.rel (0) target = $region13
    $region12: #{queue_support_set_forward.1} parent=1 // pred_region
      %s25 = sadd.s32 0, 0
      %s26 = smul.u32 64, %s25
      %p27 = scmp.lt.s32.totalorder %s26, 63
      %s28 = scalar_select %p27, %s26, 63
      %s29 = smul.addr %s28, 8
      %s30 = scalar_lea.vmem %s2, %s29
      %s31 = sadd.s32 0, 0
      %s32 = smul.u32 64, %s31
    $region13: #{queue_support_set_forward.1} parent=1 // pred_fallthru
      _
    %s33 = sadd.s32 0, 0
    %s34 = smul.u32 64, %s33
    %p35 = scmp.lt.s32.totalorder %s34, 63
    %s36 = scalar_select %p35, %s34, 63
    %s37 = smul.addr %s36, 4
    %s38 = scalar_lea.vmem %s1, %s37
    %s39 = sadd.s32 0, 0
    %s40 = smul.u32 64, %s39
    %p41 = scmp.lt.s32.totalorder %s40, 63
    %s42 = scalar_select %p41, %s40, 63
    %s43 = smul.addr %s42, 8
    %s44 = scalar_lea.vmem %s2, %s43
    %s45 = sadd.s32 0, 0
    %s46 = smul.u32 64, %s45
    %p47 = scmp.lt.s32.totalorder %s46, 63
    %s48 = scalar_select %p47, %s46, 63
    %s49 = smul.addr %s48, 4
    %s50 = scalar_lea.vmem %s1, %s49
    %s51 = sadd.s32 0, 0
    %s52 = smul.u32 64, %s51
    %s53 = sadd.s32 0, 0
    %s54 = smul.u32 64, %s53
    %p55 = scmp.lt.s32.totalorder %s54, 63
    %s56 = scalar_select %p55, %s54, 63
    %s57 = smul.addr %s56, 8
    %s58 = scalar_lea.vmem %s2, %s57
    %s59 = sadd.s32 0, 0
    %s60 = smul.u32 64, %s59
    %p62 = scmp.eq.s32.totalorder 0, 0
    // Predicated region
    $region14: #{queue_support_set_forward.1} parent=1 // pred_check
      %p63 = pneg %p62
    $region15: #{queue_support_set_forward.1} parent=1 // pred_check_branch
      %65 = sbr.rel (%p63) target = $region17
    $region16: #{queue_support_set_forward.1} parent=1 // pred_region
      %vm66 = vcmask 57344
      %67 = vst.msk [vmem:[#allocation2] sm:$0x1] %vm66, -inf
      %68 = vst.msk [vmem:[#allocation3] sm:$0x1] %vm66, 0
    $region17: #{queue_support_set_forward.1} parent=1 // pred_fallthru
      _
    %v69 = vld [vmem:[%s0] sm:$0xf]
    %v70 = vld [vmem:[%s0 + $0x4] sm:$0xf]
    %v71 = vld [vmem:[%s0 + $0x8] sm:$0xf]
    %v72 = vld [vmem:[%s0 + $0xc] sm:$0xf]
    %v73 = vld [vmem:[%s0 + $0x10] sm:$0xf]
    %v74 = vld [vmem:[%s0 + $0x14] sm:$0xf]
    %v75 = vld [vmem:[%s0 + $0x18] sm:$0xf]
    %v76 = vld [vmem:[%s0 + $0x1c] sm:$0xf]
    %v77 = vld [vmem:[%s0 + $0x20] sm:$0xf]
    %v78 = vld [vmem:[%s0 + $0x24] sm:$0xf]
    %v79 = vld [vmem:[%s0 + $0x28] sm:$0xf]
    %v80 = vld [vmem:[%s0 + $0x2c] sm:$0xf]
    %v81 = vld [vmem:[%s0 + $0x30] sm:$0xf]
    %v82 = vld [vmem:[%s0 + $0x34] sm:$0xf]
    %v83 = vld [vmem:[%s0 + $0x38] sm:$0xf]
    %v84 = vld [vmem:[%s0 + $0x3c] sm:$0xf]
    %s85 = sadd.s32 0, 0
    %s86 = smul.u32 %s85, 512
    %v87 = vld [vmem:[%s50] sm:$0xf]
    %v88 = vld [vmem:[%s50 + $0x4] sm:$0xf]
    %v89 = vld [vmem:[%s50 + $0x8] sm:$0xf]
    %v90 = vld [vmem:[%s50 + $0xc] sm:$0xf]
    %v91 = vld [vmem:[%s50 + $0x10] sm:$0xf]
    %v92 = vld [vmem:[%s50 + $0x14] sm:$0xf]
    %v93 = vld [vmem:[%s50 + $0x18] sm:$0xf]
    %v94 = vld [vmem:[%s50 + $0x1c] sm:$0xf]
    %v95 = vld [vmem:[%s50 + $0x20] sm:$0xf]
    %v96 = vld [vmem:[%s50 + $0x24] sm:$0xf]
    %v97 = vld [vmem:[%s50 + $0x28] sm:$0xf]
    %v98 = vld [vmem:[%s50 + $0x2c] sm:$0xf]
    %v99 = vld [vmem:[%s50 + $0x30] sm:$0xf]
    %v100 = vld [vmem:[%s50 + $0x34] sm:$0xf]
    %v101 = vld [vmem:[%s50 + $0x38] sm:$0xf]
    %v102 = vld [vmem:[%s50 + $0x3c] sm:$0xf]
    %v103 = vld [vmem:[%s50 + $0x40] sm:$0xf]
    %v104 = vld [vmem:[%s50 + $0x44] sm:$0xf]
    %v105 = vld [vmem:[%s50 + $0x48] sm:$0xf]
    %v106 = vld [vmem:[%s50 + $0x4c] sm:$0xf]
    %v107 = vld [vmem:[%s50 + $0x50] sm:$0xf]
    %v108 = vld [vmem:[%s50 + $0x54] sm:$0xf]
    %v109 = vld [vmem:[%s50 + $0x58] sm:$0xf]
    %v110 = vld [vmem:[%s50 + $0x5c] sm:$0xf]
    %v111 = vld [vmem:[%s50 + $0x60] sm:$0xf]
    %v112 = vld [vmem:[%s50 + $0x64] sm:$0xf]
    %v113 = vld [vmem:[%s50 + $0x68] sm:$0xf]
    %v114 = vld [vmem:[%s50 + $0x6c] sm:$0xf]
    %v115 = vld [vmem:[%s50 + $0x70] sm:$0xf]
    %v116 = vld [vmem:[%s50 + $0x74] sm:$0xf]
    %v117 = vld [vmem:[%s50 + $0x78] sm:$0xf]
    %v118 = vld [vmem:[%s50 + $0x7c] sm:$0xf]
    %v119 = vld [vmem:[%s50 + $0x80] sm:$0xf]
    %v120 = vld [vmem:[%s50 + $0x84] sm:$0xf]
    %v121 = vld [vmem:[%s50 + $0x88] sm:$0xf]
    %v122 = vld [vmem:[%s50 + $0x8c] sm:$0xf]
    %v123 = vld [vmem:[%s50 + $0x90] sm:$0xf]
    %v124 = vld [vmem:[%s50 + $0x94] sm:$0xf]
    %v125 = vld [vmem:[%s50 + $0x98] sm:$0xf]
    %v126 = vld [vmem:[%s50 + $0x9c] sm:$0xf]
    %v127 = vld [vmem:[%s50 + $0xa0] sm:$0xf]
    %v128 = vld [vmem:[%s50 + $0xa4] sm:$0xf]
    %v129 = vld [vmem:[%s50 + $0xa8] sm:$0xf]
    %v130 = vld [vmem:[%s50 + $0xac] sm:$0xf]
    %v131 = vld [vmem:[%s50 + $0xb0] sm:$0xf]
    %v132 = vld [vmem:[%s50 + $0xb4] sm:$0xf]
    %v133 = vld [vmem:[%s50 + $0xb8] sm:$0xf]
    %v134 = vld [vmem:[%s50 + $0xbc] sm:$0xf]
    %v135 = vld [vmem:[%s50 + $0xc0] sm:$0xf]
    %v136 = vld [vmem:[%s50 + $0xc4] sm:$0xf]
    %v137 = vld [vmem:[%s50 + $0xc8] sm:$0xf]
    %v138 = vld [vmem:[%s50 + $0xcc] sm:$0xf]
    %v139 = vld [vmem:[%s50 + $0xd0] sm:$0xf]
    %v140 = vld [vmem:[%s50 + $0xd4] sm:$0xf]
    %v141 = vld [vmem:[%s50 + $0xd8] sm:$0xf]
    %v142 = vld [vmem:[%s50 + $0xdc] sm:$0xf]
    %v143 = vld [vmem:[%s50 + $0xe0] sm:$0xf]
    %v144 = vld [vmem:[%s50 + $0xe4] sm:$0xf]
    %v145 = vld [vmem:[%s50 + $0xe8] sm:$0xf]
    %v146 = vld [vmem:[%s50 + $0xec] sm:$0xf]
    %v147 = vld [vmem:[%s50 + $0xf0] sm:$0xf]
    %v148 = vld [vmem:[%s50 + $0xf4] sm:$0xf]
    %v149 = vld [vmem:[%s50 + $0xf8] sm:$0xf]
    %v150 = vld [vmem:[%s50 + $0xfc] sm:$0xf]
    %v151 = vld [vmem:[%s58] sm:$0xff]
    %v152 = vld [vmem:[%s58 + $0x8] sm:$0xff]
    %v153 = vld [vmem:[%s58 + $0x10] sm:$0xff]
    %v154 = vld [vmem:[%s58 + $0x18] sm:$0xff]
    %v155 = vld [vmem:[%s58 + $0x20] sm:$0xff]
    %v156 = vld [vmem:[%s58 + $0x28] sm:$0xff]
    %v157 = vld [vmem:[%s58 + $0x30] sm:$0xff]
    %v158 = vld [vmem:[%s58 + $0x38] sm:$0xff]
    %v159 = vld [vmem:[%s58 + $0x40] sm:$0xff]
    %v160 = vld [vmem:[%s58 + $0x48] sm:$0xff]
    %v161 = vld [vmem:[%s58 + $0x50] sm:$0xff]
    %v162 = vld [vmem:[%s58 + $0x58] sm:$0xff]
    %v163 = vld [vmem:[%s58 + $0x60] sm:$0xff]
    %v164 = vld [vmem:[%s58 + $0x68] sm:$0xff]
    %v165 = vld [vmem:[%s58 + $0x70] sm:$0xff]
    %v166 = vld [vmem:[%s58 + $0x78] sm:$0xff]
    %v167 = vld [vmem:[%s58 + $0x80] sm:$0xff]
    %v168 = vld [vmem:[%s58 + $0x88] sm:$0xff]
    %v169 = vld [vmem:[%s58 + $0x90] sm:$0xff]
    %v170 = vld [vmem:[%s58 + $0x98] sm:$0xff]
    %v171 = vld [vmem:[%s58 + $0xa0] sm:$0xff]
    %v172 = vld [vmem:[%s58 + $0xa8] sm:$0xff]
    %v173 = vld [vmem:[%s58 + $0xb0] sm:$0xff]
    %v174 = vld [vmem:[%s58 + $0xb8] sm:$0xff]
    %v175 = vld [vmem:[%s58 + $0xc0] sm:$0xff]
    %v176 = vld [vmem:[%s58 + $0xc8] sm:$0xff]
    %v177 = vld [vmem:[%s58 + $0xd0] sm:$0xff]
    %v178 = vld [vmem:[%s58 + $0xd8] sm:$0xff]
    %v179 = vld [vmem:[%s58 + $0xe0] sm:$0xff]
    %v180 = vld [vmem:[%s58 + $0xe8] sm:$0xff]
    %v181 = vld [vmem:[%s58 + $0xf0] sm:$0xff]
    %v182 = vld [vmem:[%s58 + $0xf8] sm:$0xff]
    %v183 = vld [vmem:[%s58 + $0x100] sm:$0xff]
    %v184 = vld [vmem:[%s58 + $0x108] sm:$0xff]
    %v185 = vld [vmem:[%s58 + $0x110] sm:$0xff]
    %v186 = vld [vmem:[%s58 + $0x118] sm:$0xff]
    %v187 = vld [vmem:[%s58 + $0x120] sm:$0xff]
    %v188 = vld [vmem:[%s58 + $0x128] sm:$0xff]
    %v189 = vld [vmem:[%s58 + $0x130] sm:$0xff]
    %v190 = vld [vmem:[%s58 + $0x138] sm:$0xff]
    %v191 = vld [vmem:[%s58 + $0x140] sm:$0xff]
    %v192 = vld [vmem:[%s58 + $0x148] sm:$0xff]
    %v193 = vld [vmem:[%s58 + $0x150] sm:$0xff]
    %v194 = vld [vmem:[%s58 + $0x158] sm:$0xff]
    %v195 = vld [vmem:[%s58 + $0x160] sm:$0xff]
    %v196 = vld [vmem:[%s58 + $0x168] sm:$0xff]
    %v197 = vld [vmem:[%s58 + $0x170] sm:$0xff]
    %v198 = vld [vmem:[%s58 + $0x178] sm:$0xff]
    %v199 = vld [vmem:[%s58 + $0x180] sm:$0xff]
    %v200 = vld [vmem:[%s58 + $0x188] sm:$0xff]
    %v201 = vld [vmem:[%s58 + $0x190] sm:$0xff]
    %v202 = vld [vmem:[%s58 + $0x198] sm:$0xff]
    %v203 = vld [vmem:[%s58 + $0x1a0] sm:$0xff]
    %v204 = vld [vmem:[%s58 + $0x1a8] sm:$0xff]
    %v205 = vld [vmem:[%s58 + $0x1b0] sm:$0xff]
    %v206 = vld [vmem:[%s58 + $0x1b8] sm:$0xff]
    %v207 = vld [vmem:[%s58 + $0x1c0] sm:$0xff]
    %v208 = vld [vmem:[%s58 + $0x1c8] sm:$0xff]
    %v209 = vld [vmem:[%s58 + $0x1d0] sm:$0xff]
    %v210 = vld [vmem:[%s58 + $0x1d8] sm:$0xff]
    %v211 = vld [vmem:[%s58 + $0x1e0] sm:$0xff]
    %v212 = vld [vmem:[%s58 + $0x1e8] sm:$0xff]
    %v213 = vld [vmem:[%s58 + $0x1f0] sm:$0xff]
    %v214 = vld [vmem:[%s58 + $0x1f8] sm:$0xff]
    %v279 = vunpack.c.l.b16 %v87
    %v280 = vunpack.c.l.b16 %v88
    %v281 = vunpack.c.l.b16 %v89
    %v282 = vunpack.c.l.b16 %v90
    %v283 = vunpack.c.l.b16 %v91
    %v284 = vunpack.c.l.b16 %v92
    %v285 = vunpack.c.l.b16 %v93
    %v286 = vunpack.c.l.b16 %v94
    %v287 = vunpack.c.l.b16 %v95
    %v288 = vunpack.c.l.b16 %v96
    %v289 = vunpack.c.l.b16 %v97
    %v290 = vunpack.c.l.b16 %v98
    %v291 = vunpack.c.l.b16 %v99
    %v292 = vunpack.c.l.b16 %v100
    %v293 = vunpack.c.l.b16 %v101
    %v294 = vunpack.c.l.b16 %v102
    %v295 = vunpack.c.l.b16 %v103
    %v296 = vunpack.c.l.b16 %v104
    %v297 = vunpack.c.l.b16 %v105
    %v298 = vunpack.c.l.b16 %v106
    %v299 = vunpack.c.l.b16 %v107
    %v300 = vunpack.c.l.b16 %v108
    %v301 = vunpack.c.l.b16 %v109
    %v302 = vunpack.c.l.b16 %v110
    %v303 = vunpack.c.l.b16 %v111
    %v304 = vunpack.c.l.b16 %v112
    %v305 = vunpack.c.l.b16 %v113
    %v306 = vunpack.c.l.b16 %v114
    %v307 = vunpack.c.l.b16 %v115
    %v308 = vunpack.c.l.b16 %v116
    %v309 = vunpack.c.l.b16 %v117
    %v310 = vunpack.c.l.b16 %v118
    %v311 = vunpack.c.l.b16 %v119
    %v312 = vunpack.c.l.b16 %v120
    %v313 = vunpack.c.l.b16 %v121
    %v314 = vunpack.c.l.b16 %v122
    %v315 = vunpack.c.l.b16 %v123
    %v316 = vunpack.c.l.b16 %v124
    %v317 = vunpack.c.l.b16 %v125
    %v318 = vunpack.c.l.b16 %v126
    %v319 = vunpack.c.l.b16 %v127
    %v320 = vunpack.c.l.b16 %v128
    %v321 = vunpack.c.l.b16 %v129
    %v322 = vunpack.c.l.b16 %v130
    %v323 = vunpack.c.l.b16 %v131
    %v324 = vunpack.c.l.b16 %v132
    %v325 = vunpack.c.l.b16 %v133
    %v326 = vunpack.c.l.b16 %v134
    %v327 = vunpack.c.l.b16 %v135
    %v328 = vunpack.c.l.b16 %v136
    %v329 = vunpack.c.l.b16 %v137
    %v330 = vunpack.c.l.b16 %v138
    %v331 = vunpack.c.l.b16 %v139
    %v332 = vunpack.c.l.b16 %v140
    %v333 = vunpack.c.l.b16 %v141
    %v334 = vunpack.c.l.b16 %v142
    %v335 = vunpack.c.l.b16 %v143
    %v336 = vunpack.c.l.b16 %v144
    %v337 = vunpack.c.l.b16 %v145
    %v338 = vunpack.c.l.b16 %v146
    %v339 = vunpack.c.l.b16 %v147
    %v340 = vunpack.c.l.b16 %v148
    %v341 = vunpack.c.l.b16 %v149
    %v342 = vunpack.c.l.b16 %v150
    %v343 = vpack.c.b16 %v280, %v279
    %v344 = vpack.c.b16 %v282, %v281
    %v345 = vpack.c.b16 %v284, %v283
    %v346 = vpack.c.b16 %v286, %v285
    %v347 = vpack.c.b16 %v288, %v287
    %v348 = vpack.c.b16 %v290, %v289
    %v349 = vpack.c.b16 %v292, %v291
    %v350 = vpack.c.b16 %v294, %v293
    %v351 = vpack.c.b16 %v296, %v295
    %v352 = vpack.c.b16 %v298, %v297
    %v353 = vpack.c.b16 %v300, %v299
    %v354 = vpack.c.b16 %v302, %v301
    %v355 = vpack.c.b16 %v304, %v303
    %v356 = vpack.c.b16 %v306, %v305
    %v357 = vpack.c.b16 %v308, %v307
    %v358 = vpack.c.b16 %v310, %v309
    %v359 = vpack.c.b16 %v312, %v311
    %v360 = vpack.c.b16 %v314, %v313
    %v361 = vpack.c.b16 %v316, %v315
    %v362 = vpack.c.b16 %v318, %v317
    %v363 = vpack.c.b16 %v320, %v319
    %v364 = vpack.c.b16 %v322, %v321
    %v365 = vpack.c.b16 %v324, %v323
    %v366 = vpack.c.b16 %v326, %v325
    %v367 = vpack.c.b16 %v328, %v327
    %v368 = vpack.c.b16 %v330, %v329
    %v369 = vpack.c.b16 %v332, %v331
    %v370 = vpack.c.b16 %v334, %v333
    %v371 = vpack.c.b16 %v336, %v335
    %v372 = vpack.c.b16 %v338, %v337
    %v373 = vpack.c.b16 %v340, %v339
    %v374 = vpack.c.b16 %v342, %v341
    %v423 = vunpack.c.l.b16 %v69
    %v424 = vunpack.c.l.b16 %v70
    %v425 = vunpack.c.l.b16 %v71
    %v426 = vunpack.c.l.b16 %v72
    %v427 = vunpack.c.l.b16 %v73
    %v428 = vunpack.c.l.b16 %v74
    %v429 = vunpack.c.l.b16 %v75
    %v430 = vunpack.c.l.b16 %v76
    %v431 = vunpack.c.l.b16 %v77
    %v432 = vunpack.c.l.b16 %v78
    %v433 = vunpack.c.l.b16 %v79
    %v434 = vunpack.c.l.b16 %v80
    %v435 = vunpack.c.l.b16 %v81
    %v436 = vunpack.c.l.b16 %v82
    %v437 = vunpack.c.l.b16 %v83
    %v438 = vunpack.c.l.b16 %v84
    %v439 = vpack.c.b16 %v424, %v423
    %v440 = vpack.c.b16 %v426, %v425
    %v441 = vpack.c.b16 %v428, %v427
    %v442 = vpack.c.b16 %v430, %v429
    %v443 = vpack.c.b16 %v432, %v431
    %v444 = vpack.c.b16 %v434, %v433
    %v445 = vpack.c.b16 %v436, %v435
    %v446 = vpack.c.b16 %v438, %v437
    %455 = vmatprep.subr.bf16.mxu0 0
    %456 = vmatpush1.bf16.msra.mxu0 %v439
    %457 = vmatprep.subr.bf16.mxu0 0
    %458 = vmatpush1.bf16.msra.mxu0 %v440
    %459 = vmatprep.subr.bf16.mxu0 0
    %460 = vmatpush1.bf16.msra.mxu0 %v441
    %461 = vmatprep.subr.bf16.mxu0 0
    %462 = vmatpush1.bf16.msra.mxu0 %v442
    %463 = vmatprep.subr.bf16.mxu0 0
    %464 = vmatpush1.bf16.msra.mxu0 %v443
    %465 = vmatprep.subr.bf16.mxu0 0
    %466 = vmatpush1.bf16.msra.mxu0 %v444
    %467 = vmatprep.subr.bf16.mxu0 0
    %468 = vmatpush1.bf16.msra.mxu0 %v445
    %469 = vmatprep.subr.bf16.mxu0 0
    %470 = vmatpush1.bf16.msra.mxu0 %v446
    %471 = vmatprep.subr.bf16.mxu0 0
    %472 = vmatpush1.bf16.msra.mxu0 0
    %473 = vmatprep.subr.bf16.mxu0 0
    %474 = vmatpush1.bf16.msra.mxu0 0
    %475 = vmatprep.subr.bf16.mxu0 0
    %476 = vmatpush1.bf16.msra.mxu0 0
    %477 = vmatprep.subr.bf16.mxu0 0
    %478 = vmatpush1.bf16.msra.mxu0 0
    %479 = vmatprep.subr.bf16.mxu0 0
    %480 = vmatpush1.bf16.msra.mxu0 0
    %481 = vmatprep.subr.bf16.mxu0 0
    %482 = vmatpush1.bf16.msra.mxu0 0
    %483 = vmatprep.subr.bf16.mxu0 0
    %484 = vmatpush1.bf16.msra.mxu0 0
    %485 = vmatprep.subr.bf16.mxu0 0
    %486 = vmatpush1.bf16.msra.mxu0 0
    %487 = vmatprep.mubr.bf16.mxu0 0
    %488 = vmatmul.mubr.bf16.gmra.mrb[0].mxu0 %v343
    %v489 = vpop.f32.mrb[0].mxu0
    %v490 = vadd.f32 0.0, %v489
    %v491 = vpop.f32.mrb[0].mxu0
    %v492 = vpop.f32.mrb[0].mxu0
    %v493 = vadd.f32 0.0, %v492
    %v494 = vpop.f32.mrb[0].mxu0
    %495 = vmatprep.mubr.bf16.mxu0 0
    %496 = vmatmul.mubr.bf16.gmra.mrb[0].mxu0 %v344
    %v497 = vpop.f32.mrb[0].mxu0
    %v498 = vadd.f32 0.0, %v497
    %v499 = vpop.f32.mrb[0].mxu0
    %v500 = vpop.f32.mrb[0].mxu0
    %v501 = vadd.f32 0.0, %v500
    %v502 = vpop.f32.mrb[0].mxu0
    %503 = vmatprep.mubr.bf16.mxu0 0
    %504 = vmatmul.mubr.bf16.gmra.mrb[0].mxu0 %v345
    %v505 = vpop.f32.mrb[0].mxu0
    %v506 = vadd.f32 0.0, %v505
    %v507 = vpop.f32.mrb[0].mxu0
    %v508 = vpop.f32.mrb[0].mxu0
    %v509 = vadd.f32 0.0, %v508
    %v510 = vpop.f32.mrb[0].mxu0
    %511 = vmatprep.mubr.bf16.mxu0 0
    %512 = vmatmul.mubr.bf16.gmra.mrb[0].mxu0 %v346
    %v513 = vpop.f32.mrb[0].mxu0
    %v514 = vadd.f32 0.0, %v513
    %v515 = vpop.f32.mrb[0].mxu0
    %v516 = vpop.f32.mrb[0].mxu0
    %v517 = vadd.f32 0.0, %v516
    %v518 = vpop.f32.mrb[0].mxu0
    %519 = vmatprep.mubr.bf16.mxu0 0
    %520 = vmatmul.mubr.bf16.gmra.mrb[0].mxu0 %v347
    %v521 = vpop.f32.mrb[0].mxu0
    %v522 = vadd.f32 0.0, %v521
    %v523 = vpop.f32.mrb[0].mxu0
    %v524 = vpop.f32.mrb[0].mxu0
    %v525 = vadd.f32 0.0, %v524
    %v526 = vpop.f32.mrb[0].mxu0
    %527 = vmatprep.mubr.bf16.mxu0 0
    %528 = vmatmul.mubr.bf16.gmra.mrb[0].mxu0 %v348
    %v529 = vpop.f32.mrb[0].mxu0
    %v530 = vadd.f32 0.0, %v529
    %v531 = vpop.f32.mrb[0].mxu0
    %v532 = vpop.f32.mrb[0].mxu0
    %v533 = vadd.f32 0.0, %v532
    %v534 = vpop.f32.mrb[0].mxu0
    %535 = vmatprep.mubr.bf16.mxu0 0
    %536 = vmatmul.mubr.bf16.gmra.mrb[0].mxu0 %v349
    %v537 = vpop.f32.mrb[0].mxu0
    %v538 = vadd.f32 0.0, %v537
    %v539 = vpop.f32.mrb[0].mxu0
    %v540 = vpop.f32.mrb[0].mxu0
    %v541 = vadd.f32 0.0, %v540
    %v542 = vpop.f32.mrb[0].mxu0
    %543 = vmatprep.mubr.bf16.mxu0 0
    %544 = vmatmul.mubr.bf16.gmra.mrb[0].mxu0 %v350
    %v545 = vpop.f32.mrb[0].mxu0
    %v546 = vadd.f32 0.0, %v545
    %v547 = vpop.f32.mrb[0].mxu0
    %v548 = vpop.f32.mrb[0].mxu0
    %v549 = vadd.f32 0.0, %v548
    %v550 = vpop.f32.mrb[0].mxu0
    %551 = vmatprep.mubr.bf16.mxu0 0
    %552 = vmatmul.mubr.bf16.gmra.mrb[0].mxu0 %v351
    %v553 = vpop.f32.mrb[0].mxu0
    %v554 = vadd.f32 0.0, %v553
    %v555 = vpop.f32.mrb[0].mxu0
    %v556 = vpop.f32.mrb[0].mxu0
    %v557 = vadd.f32 0.0, %v556
    %v558 = vpop.f32.mrb[0].mxu0
    %559 = vmatprep.mubr.bf16.mxu0 0
    %560 = vmatmul.mubr.bf16.gmra.mrb[0].mxu0 %v352
    %v561 = vpop.f32.mrb[0].mxu0
    %v562 = vadd.f32 0.0, %v561
    %v563 = vpop.f32.mrb[0].mxu0
    %v564 = vpop.f32.mrb[0].mxu0
    %v565 = vadd.f32 0.0, %v564
    %v566 = vpop.f32.mrb[0].mxu0
    %567 = vmatprep.mubr.bf16.mxu0 0
    %568 = vmatmul.mubr.bf16.gmra.mrb[0].mxu0 %v353
    %v569 = vpop.f32.mrb[0].mxu0
    %v570 = vadd.f32 0.0, %v569
    %v571 = vpop.f32.mrb[0].mxu0
    %v572 = vpop.f32.mrb[0].mxu0
    %v573 = vadd.f32 0.0, %v572
    %v574 = vpop.f32.mrb[0].mxu0
    %575 = vmatprep.mubr.bf16.mxu0 0
    %576 = vmatmul.mubr.bf16.gmra.mrb[0].mxu0 %v354
    %v577 = vpop.f32.mrb[0].mxu0
    %v578 = vadd.f32 0.0, %v577
    %v579 = vpop.f32.mrb[0].mxu0
    %v580 = vpop.f32.mrb[0].mxu0
    %v581 = vadd.f32 0.0, %v580
    %v582 = vpop.f32.mrb[0].mxu0
    %583 = vmatprep.mubr.bf16.mxu0 0
    %584 = vmatmul.mubr.bf16.gmra.mrb[0].mxu0 %v355
    %v585 = vpop.f32.mrb[0].mxu0
    %v586 = vadd.f32 0.0, %v585
    %v587 = vpop.f32.mrb[0].mxu0
    %v588 = vpop.f32.mrb[0].mxu0
    %v589 = vadd.f32 0.0, %v588
    %v590 = vpop.f32.mrb[0].mxu0
    %591 = vmatprep.mubr.bf16.mxu0 0
    %592 = vmatmul.mubr.bf16.gmra.mrb[0].mxu0 %v356
    %v593 = vpop.f32.mrb[0].mxu0
    %v594 = vadd.f32 0.0, %v593
    %v595 = vpop.f32.mrb[0].mxu0
    %v596 = vpop.f32.mrb[0].mxu0
    %v597 = vadd.f32 0.0, %v596
    %v598 = vpop.f32.mrb[0].mxu0
    %599 = vmatprep.mubr.bf16.mxu0 0
    %600 = vmatmul.mubr.bf16.gmra.mrb[0].mxu0 %v357
    %v601 = vpop.f32.mrb[0].mxu0
    %v602 = vadd.f32 0.0, %v601
    %v603 = vpop.f32.mrb[0].mxu0
    %v604 = vpop.f32.mrb[0].mxu0
    %v605 = vadd.f32 0.0, %v604
    %v606 = vpop.f32.mrb[0].mxu0
    %607 = vmatprep.mubr.bf16.mxu0 0
    %608 = vmatmul.mubr.bf16.gmra.mrb[0].mxu0 %v358
    %v609 = vpop.f32.mrb[0].mxu0
    %v610 = vadd.f32 0.0, %v609
    %v611 = vpop.f32.mrb[0].mxu0
    %v612 = vpop.f32.mrb[0].mxu0
    %v613 = vadd.f32 0.0, %v612
    %v614 = vpop.f32.mrb[0].mxu0
    %615 = vmatprep.mubr.bf16.mxu0 0
    %616 = vmatmul.mubr.bf16.gmra.mrb[0].mxu0 %v359
    %v617 = vpop.f32.mrb[0].mxu0
    %v618 = vadd.f32 0.0, %v617
    %v619 = vpop.f32.mrb[0].mxu0
    %v620 = vpop.f32.mrb[0].mxu0
    %v621 = vadd.f32 0.0, %v620
    %v622 = vpop.f32.mrb[0].mxu0
    %623 = vmatprep.mubr.bf16.mxu0 0
    %624 = vmatmul.mubr.bf16.gmra.mrb[0].mxu0 %v360
    %v625 = vpop.f32.mrb[0].mxu0
    %v626 = vadd.f32 0.0, %v625
    %v627 = vpop.f32.mrb[0].mxu0
    %v628 = vpop.f32.mrb[0].mxu0
    %v629 = vadd.f32 0.0, %v628
    %v630 = vpop.f32.mrb[0].mxu0
    %631 = vmatprep.mubr.bf16.mxu0 0
    %632 = vmatmul.mubr.bf16.gmra.mrb[0].mxu0 %v361
    %v633 = vpop.f32.mrb[0].mxu0
    %v634 = vadd.f32 0.0, %v633
    %v635 = vpop.f32.mrb[0].mxu0
    %v636 = vpop.f32.mrb[0].mxu0
    %v637 = vadd.f32 0.0, %v636
    %v638 = vpop.f32.mrb[0].mxu0
    %639 = vmatprep.mubr.bf16.mxu0 0
    %640 = vmatmul.mubr.bf16.gmra.mrb[0].mxu0 %v362
    %v641 = vpop.f32.mrb[0].mxu0
    %v642 = vadd.f32 0.0, %v641
    %v643 = vpop.f32.mrb[0].mxu0
    %v644 = vpop.f32.mrb[0].mxu0
    %v645 = vadd.f32 0.0, %v644
    %v646 = vpop.f32.mrb[0].mxu0
    %647 = vmatprep.mubr.bf16.mxu0 0
    %648 = vmatmul.mubr.bf16.gmra.mrb[0].mxu0 %v363
    %v649 = vpop.f32.mrb[0].mxu0
    %v650 = vadd.f32 0.0, %v649
    %v651 = vpop.f32.mrb[0].mxu0
    %v652 = vpop.f32.mrb[0].mxu0
    %v653 = vadd.f32 0.0, %v652
    %v654 = vpop.f32.mrb[0].mxu0
    %655 = vmatprep.mubr.bf16.mxu0 0
    %656 = vmatmul.mubr.bf16.gmra.mrb[0].mxu0 %v364
    %v657 = vpop.f32.mrb[0].mxu0
    %v658 = vadd.f32 0.0, %v657
    %v659 = vpop.f32.mrb[0].mxu0
    %v660 = vpop.f32.mrb[0].mxu0
    %v661 = vadd.f32 0.0, %v660
    %v662 = vpop.f32.mrb[0].mxu0
    %663 = vmatprep.mubr.bf16.mxu0 0
    %664 = vmatmul.mubr.bf16.gmra.mrb[0].mxu0 %v365
    %v665 = vpop.f32.mrb[0].mxu0
    %v666 = vadd.f32 0.0, %v665
    %v667 = vpop.f32.mrb[0].mxu0
    %v668 = vpop.f32.mrb[0].mxu0
    %v669 = vadd.f32 0.0, %v668
    %v670 = vpop.f32.mrb[0].mxu0
    %671 = vmatprep.mubr.bf16.mxu0 0
    %672 = vmatmul.mubr.bf16.gmra.mrb[0].mxu0 %v366
    %v673 = vpop.f32.mrb[0].mxu0
    %v674 = vadd.f32 0.0, %v673
    %v675 = vpop.f32.mrb[0].mxu0
    %v676 = vpop.f32.mrb[0].mxu0
    %v677 = vadd.f32 0.0, %v676
    %v678 = vpop.f32.mrb[0].mxu0
    %679 = vmatprep.mubr.bf16.mxu0 0
    %680 = vmatmul.mubr.bf16.gmra.mrb[0].mxu0 %v367
    %v681 = vpop.f32.mrb[0].mxu0
    %v682 = vadd.f32 0.0, %v681
    %v683 = vpop.f32.mrb[0].mxu0
    %v684 = vpop.f32.mrb[0].mxu0
    %v685 = vadd.f32 0.0, %v684
    %v686 = vpop.f32.mrb[0].mxu0
    %687 = vmatprep.mubr.bf16.mxu0 0
    %688 = vmatmul.mubr.bf16.gmra.mrb[0].mxu0 %v368
    %v689 = vpop.f32.mrb[0].mxu0
    %v690 = vadd.f32 0.0, %v689
    %v691 = vpop.f32.mrb[0].mxu0
    %v692 = vpop.f32.mrb[0].mxu0
    %v693 = vadd.f32 0.0, %v692
    %v694 = vpop.f32.mrb[0].mxu0
    %695 = vmatprep.mubr.bf16.mxu0 0
    %696 = vmatmul.mubr.bf16.gmra.mrb[0].mxu0 %v369
    %v697 = vpop.f32.mrb[0].mxu0
    %v698 = vadd.f32 0.0, %v697
    %v699 = vpop.f32.mrb[0].mxu0
    %v700 = vpop.f32.mrb[0].mxu0
    %v701 = vadd.f32 0.0, %v700
    %v702 = vpop.f32.mrb[0].mxu0
    %703 = vmatprep.mubr.bf16.mxu0 0
    %704 = vmatmul.mubr.bf16.gmra.mrb[0].mxu0 %v370
    %v705 = vpop.f32.mrb[0].mxu0
    %v706 = vadd.f32 0.0, %v705
    %v707 = vpop.f32.mrb[0].mxu0
    %v708 = vpop.f32.mrb[0].mxu0
    %v709 = vadd.f32 0.0, %v708
    %v710 = vpop.f32.mrb[0].mxu0
    %711 = vmatprep.mubr.bf16.mxu0 0
    %712 = vmatmul.mubr.bf16.gmra.mrb[0].mxu0 %v371
    %v713 = vpop.f32.mrb[0].mxu0
    %v714 = vadd.f32 0.0, %v713
    %v715 = vpop.f32.mrb[0].mxu0
    %v716 = vpop.f32.mrb[0].mxu0
    %v717 = vadd.f32 0.0, %v716
    %v718 = vpop.f32.mrb[0].mxu0
    %719 = vmatprep.mubr.bf16.mxu0 0
    %720 = vmatmul.mubr.bf16.gmra.mrb[0].mxu0 %v372
    %v721 = vpop.f32.mrb[0].mxu0
    %v722 = vadd.f32 0.0, %v721
    %v723 = vpop.f32.mrb[0].mxu0
    %v724 = vpop.f32.mrb[0].mxu0
    %v725 = vadd.f32 0.0, %v724
    %v726 = vpop.f32.mrb[0].mxu0
    %727 = vmatprep.mubr.bf16.mxu0 0
    %728 = vmatmul.mubr.bf16.gmra.mrb[0].mxu0 %v373
    %v729 = vpop.f32.mrb[0].mxu0
    %v730 = vadd.f32 0.0, %v729
    %v731 = vpop.f32.mrb[0].mxu0
    %v732 = vpop.f32.mrb[0].mxu0
    %v733 = vadd.f32 0.0, %v732
    %v734 = vpop.f32.mrb[0].mxu0
    %735 = vmatprep.mubr.bf16.mxu0 0
    %736 = vmatmul.mubr.bf16.gmra.mrb[0].mxu0 %v374
    %v737 = vpop.f32.mrb[0].mxu0
    %v738 = vadd.f32 0.0, %v737
    %v739 = vpop.f32.mrb[0].mxu0
    %v740 = vpop.f32.mrb[0].mxu0
    %v741 = vadd.f32 0.0, %v740
    %v742 = vpop.f32.mrb[0].mxu0
    %743 = vdwg.mxu0
    %745 = vset.pattern.permute.xlu0 0
    %746 = vperm.xlu0 %745, %v151
    %v747 = vpop.permute.xlu0 %746
    %750 = vset.pattern.permute.xlu0 0
    %751 = vperm.xlu0 %750, %v152
    %v752 = vpop.permute.xlu0 %751
    %755 = vset.pattern.permute.xlu0 0
    %756 = vperm.xlu0 %755, %v153
    %v757 = vpop.permute.xlu0 %756
    %760 = vset.pattern.permute.xlu0 0
    %761 = vperm.xlu0 %760, %v154
    %v762 = vpop.permute.xlu0 %761
    %765 = vset.pattern.permute.xlu0 0
    %766 = vperm.xlu0 %765, %v155
    %v767 = vpop.permute.xlu0 %766
    %770 = vset.pattern.permute.xlu0 0
    %771 = vperm.xlu0 %770, %v156
    %v772 = vpop.permute.xlu0 %771
    %775 = vset.pattern.permute.xlu0 0
    %776 = vperm.xlu0 %775, %v157
    %v777 = vpop.permute.xlu0 %776
    %780 = vset.pattern.permute.xlu0 0
    %781 = vperm.xlu0 %780, %v158
    %v782 = vpop.permute.xlu0 %781
    %785 = vset.pattern.permute.xlu0 0
    %786 = vperm.xlu0 %785, %v159
    %v787 = vpop.permute.xlu0 %786
    %790 = vset.pattern.permute.xlu0 0
    %791 = vperm.xlu0 %790, %v160
    %v792 = vpop.permute.xlu0 %791
    %795 = vset.pattern.permute.xlu0 0
    %796 = vperm.xlu0 %795, %v161
    %v797 = vpop.permute.xlu0 %796
    %800 = vset.pattern.permute.xlu0 0
    %801 = vperm.xlu0 %800, %v162
    %v802 = vpop.permute.xlu0 %801
    %805 = vset.pattern.permute.xlu0 0
    %806 = vperm.xlu0 %805, %v163
    %v807 = vpop.permute.xlu0 %806
    %810 = vset.pattern.permute.xlu0 0
    %811 = vperm.xlu0 %810, %v164
    %v812 = vpop.permute.xlu0 %811
    %815 = vset.pattern.permute.xlu0 0
    %816 = vperm.xlu0 %815, %v165
    %v817 = vpop.permute.xlu0 %816
    %820 = vset.pattern.permute.xlu0 0
    %821 = vperm.xlu0 %820, %v166
    %v822 = vpop.permute.xlu0 %821
    %825 = vset.pattern.permute.xlu0 0
    %826 = vperm.xlu0 %825, %v167
    %v827 = vpop.permute.xlu0 %826
    %830 = vset.pattern.permute.xlu0 0
    %831 = vperm.xlu0 %830, %v168
    %v832 = vpop.permute.xlu0 %831
    %835 = vset.pattern.permute.xlu0 0
    %836 = vperm.xlu0 %835, %v169
    %v837 = vpop.permute.xlu0 %836
    %840 = vset.pattern.permute.xlu0 0
    %841 = vperm.xlu0 %840, %v170
    %v842 = vpop.permute.xlu0 %841
    %845 = vset.pattern.permute.xlu0 0
    %846 = vperm.xlu0 %845, %v171
    %v847 = vpop.permute.xlu0 %846
    %850 = vset.pattern.permute.xlu0 0
    %851 = vperm.xlu0 %850, %v172
    %v852 = vpop.permute.xlu0 %851
    %855 = vset.pattern.permute.xlu0 0
    %856 = vperm.xlu0 %855, %v173
    %v857 = vpop.permute.xlu0 %856
    %860 = vset.pattern.permute.xlu0 0
    %861 = vperm.xlu0 %860, %v174
    %v862 = vpop.permute.xlu0 %861
    %865 = vset.pattern.permute.xlu0 0
    %866 = vperm.xlu0 %865, %v175
    %v867 = vpop.permute.xlu0 %866
    %870 = vset.pattern.permute.xlu0 0
    %871 = vperm.xlu0 %870, %v176
    %v872 = vpop.permute.xlu0 %871
    %875 = vset.pattern.permute.xlu0 0
    %876 = vperm.xlu0 %875, %v177
    %v877 = vpop.permute.xlu0 %876
    %880 = vset.pattern.permute.xlu0 0
    %881 = vperm.xlu0 %880, %v178
    %v882 = vpop.permute.xlu0 %881
    %885 = vset.pattern.permute.xlu0 0
    %886 = vperm.xlu0 %885, %v179
    %v887 = vpop.permute.xlu0 %886
    %890 = vset.pattern.permute.xlu0 0
    %891 = vperm.xlu0 %890, %v180
    %v892 = vpop.permute.xlu0 %891
    %895 = vset.pattern.permute.xlu0 0
    %896 = vperm.xlu0 %895, %v181
    %v897 = vpop.permute.xlu0 %896
    %900 = vset.pattern.permute.xlu0 0
    %901 = vperm.xlu0 %900, %v182
    %v902 = vpop.permute.xlu0 %901
    %905 = vset.pattern.permute.xlu0 0
    %906 = vperm.xlu0 %905, %v183
    %v907 = vpop.permute.xlu0 %906
    %910 = vset.pattern.permute.xlu0 0
    %911 = vperm.xlu0 %910, %v184
    %v912 = vpop.permute.xlu0 %911
    %915 = vset.pattern.permute.xlu0 0
    %916 = vperm.xlu0 %915, %v185
    %v917 = vpop.permute.xlu0 %916
    %920 = vset.pattern.permute.xlu0 0
    %921 = vperm.xlu0 %920, %v186
    %v922 = vpop.permute.xlu0 %921
    %925 = vset.pattern.permute.xlu0 0
    %926 = vperm.xlu0 %925, %v187
    %v927 = vpop.permute.xlu0 %926
    %930 = vset.pattern.permute.xlu0 0
    %931 = vperm.xlu0 %930, %v188
    %v932 = vpop.permute.xlu0 %931
    %935 = vset.pattern.permute.xlu0 0
    %936 = vperm.xlu0 %935, %v189
    %v937 = vpop.permute.xlu0 %936
    %940 = vset.pattern.permute.xlu0 0
    %941 = vperm.xlu0 %940, %v190
    %v942 = vpop.permute.xlu0 %941
    %945 = vset.pattern.permute.xlu0 0
    %946 = vperm.xlu0 %945, %v191
    %v947 = vpop.permute.xlu0 %946
    %950 = vset.pattern.permute.xlu0 0
    %951 = vperm.xlu0 %950, %v192
    %v952 = vpop.permute.xlu0 %951
    %955 = vset.pattern.permute.xlu0 0
    %956 = vperm.xlu0 %955, %v193
    %v957 = vpop.permute.xlu0 %956
    %960 = vset.pattern.permute.xlu0 0
    %961 = vperm.xlu0 %960, %v194
    %v962 = vpop.permute.xlu0 %961
    %965 = vset.pattern.permute.xlu0 0
    %966 = vperm.xlu0 %965, %v195
    %v967 = vpop.permute.xlu0 %966
    %970 = vset.pattern.permute.xlu0 0
    %971 = vperm.xlu0 %970, %v196
    %v972 = vpop.permute.xlu0 %971
    %975 = vset.pattern.permute.xlu0 0
    %976 = vperm.xlu0 %975, %v197
    %v977 = vpop.permute.xlu0 %976
    %980 = vset.pattern.permute.xlu0 0
    %981 = vperm.xlu0 %980, %v198
    %v982 = vpop.permute.xlu0 %981
    %985 = vset.pattern.permute.xlu0 0
    %986 = vperm.xlu0 %985, %v199
    %v987 = vpop.permute.xlu0 %986
    %990 = vset.pattern.permute.xlu0 0
    %991 = vperm.xlu0 %990, %v200
    %v992 = vpop.permute.xlu0 %991
    %995 = vset.pattern.permute.xlu0 0
    %996 = vperm.xlu0 %995, %v201
    %v997 = vpop.permute.xlu0 %996
    %1000 = vset.pattern.permute.xlu0 0
    %1001 = vperm.xlu0 %1000, %v202
    %v1002 = vpop.permute.xlu0 %1001
    %1005 = vset.pattern.permute.xlu0 0
    %1006 = vperm.xlu0 %1005, %v203
    %v1007 = vpop.permute.xlu0 %1006
    %1010 = vset.pattern.permute.xlu0 0
    %1011 = vperm.xlu0 %1010, %v204
    %v1012 = vpop.permute.xlu0 %1011
    %1015 = vset.pattern.permute.xlu0 0
    %1016 = vperm.xlu0 %1015, %v205
    %v1017 = vpop.permute.xlu0 %1016
    %1020 = vset.pattern.permute.xlu0 0
    %1021 = vperm.xlu0 %1020, %v206
    %v1022 = vpop.permute.xlu0 %1021
    %1025 = vset.pattern.permute.xlu0 0
    %1026 = vperm.xlu0 %1025, %v207
    %v1027 = vpop.permute.xlu0 %1026
    %1030 = vset.pattern.permute.xlu0 0
    %1031 = vperm.xlu0 %1030, %v208
    %v1032 = vpop.permute.xlu0 %1031
    %1035 = vset.pattern.permute.xlu0 0
    %1036 = vperm.xlu0 %1035, %v209
    %v1037 = vpop.permute.xlu0 %1036
    %1040 = vset.pattern.permute.xlu0 0
    %1041 = vperm.xlu0 %1040, %v210
    %v1042 = vpop.permute.xlu0 %1041
    %1045 = vset.pattern.permute.xlu0 0
    %1046 = vperm.xlu0 %1045, %v211
    %v1047 = vpop.permute.xlu0 %1046
    %1050 = vset.pattern.permute.xlu0 0
    %1051 = vperm.xlu0 %1050, %v212
    %v1052 = vpop.permute.xlu0 %1051
    %1055 = vset.pattern.permute.xlu0 0
    %1056 = vperm.xlu0 %1055, %v213
    %v1057 = vpop.permute.xlu0 %1056
    %1060 = vset.pattern.permute.xlu0 0
    %1061 = vperm.xlu0 %1060, %v214
    %v1062 = vpop.permute.xlu0 %1061
    %v1064 = vmul.f32 %v490, %v747
    %v1065 = vmul.f32 %v493, %v752
    %v1066 = vmul.f32 %v498, %v757
    %v1067 = vmul.f32 %v501, %v762
    %v1068 = vmul.f32 %v506, %v767
    %v1069 = vmul.f32 %v509, %v772
    %v1070 = vmul.f32 %v514, %v777
    %v1071 = vmul.f32 %v517, %v782
    %v1072 = vmul.f32 %v522, %v787
    %v1073 = vmul.f32 %v525, %v792
    %v1074 = vmul.f32 %v530, %v797
    %v1075 = vmul.f32 %v533, %v802
    %v1076 = vmul.f32 %v538, %v807
    %v1077 = vmul.f32 %v541, %v812
    %v1078 = vmul.f32 %v546, %v817
    %v1079 = vmul.f32 %v549, %v822
    %v1080 = vmul.f32 %v554, %v827
    %v1081 = vmul.f32 %v557, %v832
    %v1082 = vmul.f32 %v562, %v837
    %v1083 = vmul.f32 %v565, %v842
    %v1084 = vmul.f32 %v570, %v847
    %v1085 = vmul.f32 %v573, %v852
    %v1086 = vmul.f32 %v578, %v857
    %v1087 = vmul.f32 %v581, %v862
    %v1088 = vmul.f32 %v586, %v867
    %v1089 = vmul.f32 %v589, %v872
    %v1090 = vmul.f32 %v594, %v877
    %v1091 = vmul.f32 %v597, %v882
    %v1092 = vmul.f32 %v602, %v887
    %v1093 = vmul.f32 %v605, %v892
    %v1094 = vmul.f32 %v610, %v897
    %v1095 = vmul.f32 %v613, %v902
    %v1096 = vmul.f32 %v618, %v907
    %v1097 = vmul.f32 %v621, %v912
    %v1098 = vmul.f32 %v626, %v917
    %v1099 = vmul.f32 %v629, %v922
    %v1100 = vmul.f32 %v634, %v927
    %v1101 = vmul.f32 %v637, %v932
    %v1102 = vmul.f32 %v642, %v937
    %v1103 = vmul.f32 %v645, %v942
    %v1104 = vmul.f32 %v650, %v947
    %v1105 = vmul.f32 %v653, %v952
    %v1106 = vmul.f32 %v658, %v957
    %v1107 = vmul.f32 %v661, %v962
    %v1108 = vmul.f32 %v666, %v967
    %v1109 = vmul.f32 %v669, %v972
    %v1110 = vmul.f32 %v674, %v977
    %v1111 = vmul.f32 %v677, %v982
    %v1112 = vmul.f32 %v682, %v987
    %v1113 = vmul.f32 %v685, %v992
    %v1114 = vmul.f32 %v690, %v997
    %v1115 = vmul.f32 %v693, %v1002
    %v1116 = vmul.f32 %v698, %v1007
    %v1117 = vmul.f32 %v701, %v1012
    %v1118 = vmul.f32 %v706, %v1017
    %v1119 = vmul.f32 %v709, %v1022
    %v1120 = vmul.f32 %v714, %v1027
    %v1121 = vmul.f32 %v717, %v1032
    %v1122 = vmul.f32 %v722, %v1037
    %v1123 = vmul.f32 %v725, %v1042
    %v1124 = vmul.f32 %v730, %v1047
    %v1125 = vmul.f32 %v733, %v1052
    %v1126 = vmul.f32 %v738, %v1057
    %v1127 = vmul.f32 %v741, %v1062
    %vm1128 = vcmask 64512
    %v1129 = vsel %vm1128, %v1064, -inf
    %v1130 = vsel %vm1128, %v1065, -inf
    %v1131 = vsel %vm1128, %v1066, -inf
    %v1132 = vsel %vm1128, %v1067, -inf
    %v1133 = vsel %vm1128, %v1068, -inf
    %v1134 = vmax.f32 %v1129, %v1133
    %v1135 = vsel %vm1128, %v1069, -inf
    %v1136 = vmax.f32 %v1130, %v1135
    %v1137 = vsel %vm1128, %v1070, -inf
    %v1138 = vmax.f32 %v1131, %v1137
    %v1139 = vsel %vm1128, %v1071, -inf
    %v1140 = vmax.f32 %v1132, %v1139
    %v1141 = vsel %vm1128, %v1072, -inf
    %v1142 = vmax.f32 %v1134, %v1141
    %v1143 = vsel %vm1128, %v1073, -inf
    %v1144 = vmax.f32 %v1136, %v1143
    %v1145 = vsel %vm1128, %v1074, -inf
    %v1146 = vmax.f32 %v1138, %v1145
    %v1147 = vsel %vm1128, %v1075, -inf
    %v1148 = vmax.f32 %v1140, %v1147
    %v1149 = vsel %vm1128, %v1076, -inf
    %v1150 = vmax.f32 %v1142, %v1149
    %v1151 = vsel %vm1128, %v1077, -inf
    %v1152 = vmax.f32 %v1144, %v1151
    %v1153 = vsel %vm1128, %v1078, -inf
    %v1154 = vmax.f32 %v1146, %v1153
    %v1155 = vsel %vm1128, %v1079, -inf
    %v1156 = vmax.f32 %v1148, %v1155
    %v1157 = vsel %vm1128, %v1080, -inf
    %v1158 = vmax.f32 %v1150, %v1157
    %v1159 = vsel %vm1128, %v1081, -inf
    %v1160 = vmax.f32 %v1152, %v1159
    %v1161 = vsel %vm1128, %v1082, -inf
    %v1162 = vmax.f32 %v1154, %v1161
    %v1163 = vsel %vm1128, %v1083, -inf
    %v1164 = vmax.f32 %v1156, %v1163
    %v1165 = vsel %vm1128, %v1084, -inf
    %v1166 = vmax.f32 %v1158, %v1165
    %v1167 = vsel %vm1128, %v1085, -inf
    %v1168 = vmax.f32 %v1160, %v1167
    %v1169 = vsel %vm1128, %v1086, -inf
    %v1170 = vmax.f32 %v1162, %v1169
    %v1171 = vsel %vm1128, %v1087, -inf
    %v1172 = vmax.f32 %v1164, %v1171
    %v1173 = vsel %vm1128, %v1088, -inf
    %v1174 = vmax.f32 %v1166, %v1173
    %v1175 = vsel %vm1128, %v1089, -inf
    %v1176 = vmax.f32 %v1168, %v1175
    %v1177 = vsel %vm1128, %v1090, -inf
    %v1178 = vmax.f32 %v1170, %v1177
    %v1179 = vsel %vm1128, %v1091, -inf
    %v1180 = vmax.f32 %v1172, %v1179
    %v1181 = vsel %vm1128, %v1092, -inf
    %v1182 = vmax.f32 %v1174, %v1181
    %v1183 = vsel %vm1128, %v1093, -inf
    %v1184 = vmax.f32 %v1176, %v1183
    %v1185 = vsel %vm1128, %v1094, -inf
    %v1186 = vmax.f32 %v1178, %v1185
    %v1187 = vsel %vm1128, %v1095, -inf
    %v1188 = vmax.f32 %v1180, %v1187
    %v1189 = vsel %vm1128, %v1096, -inf
    %v1190 = vmax.f32 %v1182, %v1189
    %v1191 = vsel %vm1128, %v1097, -inf
    %v1192 = vmax.f32 %v1184, %v1191
    %v1193 = vsel %vm1128, %v1098, -inf
    %v1194 = vmax.f32 %v1186, %v1193
    %v1195 = vsel %vm1128, %v1099, -inf
    %v1196 = vmax.f32 %v1188, %v1195
    %v1197 = vsel %vm1128, %v1100, -inf
    %v1198 = vmax.f32 %v1190, %v1197
    %v1199 = vsel %vm1128, %v1101, -inf
    %v1200 = vmax.f32 %v1192, %v1199
    %v1201 = vsel %vm1128, %v1102, -inf
    %v1202 = vmax.f32 %v1194, %v1201
    %v1203 = vsel %vm1128, %v1103, -inf
    %v1204 = vmax.f32 %v1196, %v1203
    %v1205 = vsel %vm1128, %v1104, -inf
    %v1206 = vmax.f32 %v1198, %v1205
    %v1207 = vsel %vm1128, %v1105, -inf
    %v1208 = vmax.f32 %v1200, %v1207
    %v1209 = vsel %vm1128, %v1106, -inf
    %v1210 = vmax.f32 %v1202, %v1209
    %v1211 = vsel %vm1128, %v1107, -inf
    %v1212 = vmax.f32 %v1204, %v1211
    %v1213 = vsel %vm1128, %v1108, -inf
    %v1214 = vmax.f32 %v1206, %v1213
    %v1215 = vsel %vm1128, %v1109, -inf
    %v1216 = vmax.f32 %v1208, %v1215
    %v1217 = vsel %vm1128, %v1110, -inf
    %v1218 = vmax.f32 %v1210, %v1217
    %v1219 = vsel %vm1128, %v1111, -inf
    %v1220 = vmax.f32 %v1212, %v1219
    %v1221 = vsel %vm1128, %v1112, -inf
    %v1222 = vmax.f32 %v1214, %v1221
    %v1223 = vsel %vm1128, %v1113, -inf
    %v1224 = vmax.f32 %v1216, %v1223
    %v1225 = vsel %vm1128, %v1114, -inf
    %v1226 = vmax.f32 %v1218, %v1225
    %v1227 = vsel %vm1128, %v1115, -inf
    %v1228 = vmax.f32 %v1220, %v1227
    %v1229 = vsel %vm1128, %v1116, -inf
    %v1230 = vmax.f32 %v1222, %v1229
    %v1231 = vsel %vm1128, %v1117, -inf
    %v1232 = vmax.f32 %v1224, %v1231
    %v1233 = vsel %vm1128, %v1118, -inf
    %v1234 = vmax.f32 %v1226, %v1233
    %v1235 = vsel %vm1128, %v1119, -inf
    %v1236 = vmax.f32 %v1228, %v1235
    %v1237 = vsel %vm1128, %v1120, -inf
    %v1238 = vmax.f32 %v1230, %v1237
    %v1239 = vsel %vm1128, %v1121, -inf
    %v1240 = vmax.f32 %v1232, %v1239
    %v1241 = vsel %vm1128, %v1122, -inf
    %v1242 = vmax.f32 %v1234, %v1241
    %v1243 = vsel %vm1128, %v1123, -inf
    %v1244 = vmax.f32 %v1236, %v1243
    %v1245 = vsel %vm1128, %v1124, -inf
    %v1246 = vmax.f32 %v1238, %v1245
    %v1247 = vsel %vm1128, %v1125, -inf
    %v1248 = vmax.f32 %v1240, %v1247
    %v1249 = vsel %vm1128, %v1126, -inf
    %v1250 = vmax.f32 %v1242, %v1249
    %v1251 = vsel %vm1128, %v1127, -inf
    %v1252 = vmax.f32 %v1244, %v1251
    %v1253 = vmax.f32 %v1246, %v1248
    %v1254 = vmax.f32 %v1250, %v1252
    %v1255 = vmax.f32 %v1253, %v1254
    %v1256 = vrot.slane %v1255, 4
    %v1257 = vmax.f32 %v1255, %v1256
    %v1258 = vrot.slane %v1257, 2
    %v1259 = vmax.f32 %v1257, %v1258
    %v1260 = vrot.slane %v1259, 1
    %v1261 = vmax.f32 %v1259, %v1260
    %v1262 = vlaneseq
    %v1263 = vshrl.u32 %v1262, 7
    %v1264 = vadd.s32 %v1263, 8
    %v1265 = vadd.s32 %v1263, 16
    %v1266 = vadd.s32 %v1263, 24
    %v1267 = vadd.s32 %v1263, 32
    %v1268 = vadd.s32 %v1263, 40
    %v1269 = vadd.s32 %v1263, 48
    %v1270 = vadd.s32 %v1263, 56
    %v1271 = vadd.s32 %v1263, 64
    %v1272 = vadd.s32 %v1263, 72
    %v1273 = vadd.s32 %v1263, 80
    %v1274 = vadd.s32 %v1263, 88
    %v1275 = vadd.s32 %v1263, 96
    %v1276 = vadd.s32 %v1263, 104
    %v1277 = vadd.s32 %v1263, 112
    %v1278 = vadd.s32 %v1263, 120
    %v1279 = vadd.s32 %v1263, 128
    %v1280 = vadd.s32 %v1263, 136
    %v1281 = vadd.s32 %v1263, 144
    %v1282 = vadd.s32 %v1263, 152
    %v1283 = vadd.s32 %v1263, 160
    %v1284 = vadd.s32 %v1263, 168
    %v1285 = vadd.s32 %v1263, 176
    %v1286 = vadd.s32 %v1263, 184
    %v1287 = vadd.s32 %v1263, 192
    %v1288 = vadd.s32 %v1263, 200
    %v1289 = vadd.s32 %v1263, 208
    %v1290 = vadd.s32 %v1263, 216
    %v1291 = vadd.s32 %v1263, 224
    %v1292 = vadd.s32 %v1263, 232
    %v1293 = vadd.s32 %v1263, 240
    %v1294 = vadd.s32 %v1263, 248
    %v1295 = vadd.s32 %v1263, 256
    %v1296 = vadd.s32 %v1263, 264
    %v1297 = vadd.s32 %v1263, 272
    %v1298 = vadd.s32 %v1263, 280
    %v1299 = vadd.s32 %v1263, 288
    %v1300 = vadd.s32 %v1263, 296
    %v1301 = vadd.s32 %v1263, 304
    %v1302 = vadd.s32 %v1263, 312
    %v1303 = vadd.s32 %v1263, 320
    %v1304 = vadd.s32 %v1263, 328
    %v1305 = vadd.s32 %v1263, 336
    %v1306 = vadd.s32 %v1263, 344
    %v1307 = vadd.s32 %v1263, 352
    %v1308 = vadd.s32 %v1263, 360
    %v1309 = vadd.s32 %v1263, 368
    %v1310 = vadd.s32 %v1263, 376
    %v1311 = vadd.s32 %v1263, 384
    %v1312 = vadd.s32 %v1263, 392
    %v1313 = vadd.s32 %v1263, 400
    %v1314 = vadd.s32 %v1263, 408
    %v1315 = vadd.s32 %v1263, 416
    %v1316 = vadd.s32 %v1263, 424
    %v1317 = vadd.s32 %v1263, 432
    %v1318 = vadd.s32 %v1263, 440
    %v1319 = vadd.s32 %v1263, 448
    %v1320 = vadd.s32 %v1263, 456
    %v1321 = vadd.s32 %v1263, 464
    %v1322 = vadd.s32 %v1263, 472
    %v1323 = vadd.s32 %v1263, 480
    %v1324 = vadd.s32 %v1263, 488
    %v1325 = vadd.s32 %v1263, 496
    %v1326 = vadd.s32 %v1263, 504
    %vm1327 = vcmp.eq.f32.partialorder %v1064, %v1261
    %vm1328 = vcmp.eq.f32.partialorder %v1065, %v1261
    %vm1329 = vcmp.eq.f32.partialorder %v1066, %v1261
    %vm1330 = vcmp.eq.f32.partialorder %v1067, %v1261
    %vm1331 = vcmp.eq.f32.partialorder %v1068, %v1261
    %vm1332 = vcmp.eq.f32.partialorder %v1069, %v1261
    %vm1333 = vcmp.eq.f32.partialorder %v1070, %v1261
    %vm1334 = vcmp.eq.f32.partialorder %v1071, %v1261
    %vm1335 = vcmp.eq.f32.partialorder %v1072, %v1261
    %vm1336 = vcmp.eq.f32.partialorder %v1073, %v1261
    %vm1337 = vcmp.eq.f32.partialorder %v1074, %v1261
    %vm1338 = vcmp.eq.f32.partialorder %v1075, %v1261
    %vm1339 = vcmp.eq.f32.partialorder %v1076, %v1261
    %vm1340 = vcmp.eq.f32.partialorder %v1077, %v1261
    %vm1341 = vcmp.eq.f32.partialorder %v1078, %v1261
    %vm1342 = vcmp.eq.f32.partialorder %v1079, %v1261
    %vm1343 = vcmp.eq.f32.partialorder %v1080, %v1261
    %vm1344 = vcmp.eq.f32.partialorder %v1081, %v1261
    %vm1345 = vcmp.eq.f32.partialorder %v1082, %v1261
    %vm1346 = vcmp.eq.f32.partialorder %v1083, %v1261
    %vm1347 = vcmp.eq.f32.partialorder %v1084, %v1261
    %vm1348 = vcmp.eq.f32.partialorder %v1085, %v1261
    %vm1349 = vcmp.eq.f32.partialorder %v1086, %v1261
    %vm1350 = vcmp.eq.f32.partialorder %v1087, %v1261
    %vm1351 = vcmp.eq.f32.partialorder %v1088, %v1261
    %vm1352 = vcmp.eq.f32.partialorder %v1089, %v1261
    %vm1353 = vcmp.eq.f32.partialorder %v1090, %v1261
    %vm1354 = vcmp.eq.f32.partialorder %v1091, %v1261
    %vm1355 = vcmp.eq.f32.partialorder %v1092, %v1261
    %vm1356 = vcmp.eq.f32.partialorder %v1093, %v1261
    %vm1357 = vcmp.eq.f32.partialorder %v1094, %v1261
    %vm1358 = vcmp.eq.f32.partialorder %v1095, %v1261
    %vm1359 = vcmp.eq.f32.partialorder %v1096, %v1261
    %vm1360 = vcmp.eq.f32.partialorder %v1097, %v1261
    %vm1361 = vcmp.eq.f32.partialorder %v1098, %v1261
    %vm1362 = vcmp.eq.f32.partialorder %v1099, %v1261
    %vm1363 = vcmp.eq.f32.partialorder %v1100, %v1261
    %vm1364 = vcmp.eq.f32.partialorder %v1101, %v1261
    %vm1365 = vcmp.eq.f32.partialorder %v1102, %v1261
    %vm1366 = vcmp.eq.f32.partialorder %v1103, %v1261
    %vm1367 = vcmp.eq.f32.partialorder %v1104, %v1261
    %vm1368 = vcmp.eq.f32.partialorder %v1105, %v1261
    %vm1369 = vcmp.eq.f32.partialorder %v1106, %v1261
    %vm1370 = vcmp.eq.f32.partialorder %v1107, %v1261
    %vm1371 = vcmp.eq.f32.partialorder %v1108, %v1261
    %vm1372 = vcmp.eq.f32.partialorder %v1109, %v1261
    %vm1373 = vcmp.eq.f32.partialorder %v1110, %v1261
    %vm1374 = vcmp.eq.f32.partialorder %v1111, %v1261
    %vm1375 = vcmp.eq.f32.partialorder %v1112, %v1261
    %vm1376 = vcmp.eq.f32.partialorder %v1113, %v1261
    %vm1377 = vcmp.eq.f32.partialorder %v1114, %v1261
    %vm1378 = vcmp.eq.f32.partialorder %v1115, %v1261
    %vm1379 = vcmp.eq.f32.partialorder %v1116, %v1261
    %vm1380 = vcmp.eq.f32.partialorder %v1117, %v1261
    %vm1381 = vcmp.eq.f32.partialorder %v1118, %v1261
    %vm1382 = vcmp.eq.f32.partialorder %v1119, %v1261
    %vm1383 = vcmp.eq.f32.partialorder %v1120, %v1261
    %vm1384 = vcmp.eq.f32.partialorder %v1121, %v1261
    %vm1385 = vcmp.eq.f32.partialorder %v1122, %v1261
    %vm1386 = vcmp.eq.f32.partialorder %v1123, %v1261
    %vm1387 = vcmp.eq.f32.partialorder %v1124, %v1261
    %vm1388 = vcmp.eq.f32.partialorder %v1125, %v1261
    %vm1389 = vcmp.eq.f32.partialorder %v1126, %v1261
    %vm1390 = vcmp.eq.f32.partialorder %v1127, %v1261
    %v1391 = vsel %vm1327, %v1263, 1073741824
    %v1392 = vsel %vm1328, %v1264, 1073741824
    %v1393 = vsel %vm1329, %v1265, 1073741824
    %v1394 = vsel %vm1330, %v1266, 1073741824
    %v1395 = vsel %vm1331, %v1267, 1073741824
    %v1396 = vsel %vm1332, %v1268, 1073741824
    %v1397 = vsel %vm1333, %v1269, 1073741824
    %v1398 = vsel %vm1334, %v1270, 1073741824
    %v1399 = vsel %vm1335, %v1271, 1073741824
    %v1400 = vsel %vm1336, %v1272, 1073741824
    %v1401 = vsel %vm1337, %v1273, 1073741824
    %v1402 = vsel %vm1338, %v1274, 1073741824
    %v1403 = vsel %vm1339, %v1275, 1073741824
    %v1404 = vsel %vm1340, %v1276, 1073741824
    %v1405 = vsel %vm1341, %v1277, 1073741824
    %v1406 = vsel %vm1342, %v1278, 1073741824
    %v1407 = vsel %vm1343, %v1279, 1073741824
    %v1408 = vsel %vm1344, %v1280, 1073741824
    %v1409 = vsel %vm1345, %v1281, 1073741824
    %v1410 = vsel %vm1346, %v1282, 1073741824
    %v1411 = vsel %vm1347, %v1283, 1073741824
    %v1412 = vsel %vm1348, %v1284, 1073741824
    %v1413 = vsel %vm1349, %v1285, 1073741824
    %v1414 = vsel %vm1350, %v1286, 1073741824
    %v1415 = vsel %vm1351, %v1287, 1073741824
    %v1416 = vsel %vm1352, %v1288, 1073741824
    %v1417 = vsel %vm1353, %v1289, 1073741824
    %v1418 = vsel %vm1354, %v1290, 1073741824
    %v1419 = vsel %vm1355, %v1291, 1073741824
    %v1420 = vsel %vm1356, %v1292, 1073741824
    %v1421 = vsel %vm1357, %v1293, 1073741824
    %v1422 = vsel %vm1358, %v1294, 1073741824
    %v1423 = vsel %vm1359, %v1295, 1073741824
    %v1424 = vsel %vm1360, %v1296, 1073741824
    %v1425 = vsel %vm1361, %v1297, 1073741824
    %v1426 = vsel %vm1362, %v1298, 1073741824
    %v1427 = vsel %vm1363, %v1299, 1073741824
    %v1428 = vsel %vm1364, %v1300, 1073741824
    %v1429 = vsel %vm1365, %v1301, 1073741824
    %v1430 = vsel %vm1366, %v1302, 1073741824
    %v1431 = vsel %vm1367, %v1303, 1073741824
    %v1432 = vsel %vm1368, %v1304, 1073741824
    %v1433 = vsel %vm1369, %v1305, 1073741824
    %v1434 = vsel %vm1370, %v1306, 1073741824
    %v1435 = vsel %vm1371, %v1307, 1073741824
    %v1436 = vsel %vm1372, %v1308, 1073741824
    %v1437 = vsel %vm1373, %v1309, 1073741824
    %v1438 = vsel %vm1374, %v1310, 1073741824
    %v1439 = vsel %vm1375, %v1311, 1073741824
    %v1440 = vsel %vm1376, %v1312, 1073741824
    %v1441 = vsel %vm1377, %v1313, 1073741824
    %v1442 = vsel %vm1378, %v1314, 1073741824
    %v1443 = vsel %vm1379, %v1315, 1073741824
    %v1444 = vsel %vm1380, %v1316, 1073741824
    %v1445 = vsel %vm1381, %v1317, 1073741824
    %v1446 = vsel %vm1382, %v1318, 1073741824
    %v1447 = vsel %vm1383, %v1319, 1073741824
    %v1448 = vsel %vm1384, %v1320, 1073741824
    %v1449 = vsel %vm1385, %v1321, 1073741824
    %v1450 = vsel %vm1386, %v1322, 1073741824
    %v1451 = vsel %vm1387, %v1323, 1073741824
    %v1452 = vsel %vm1388, %v1324, 1073741824
    %v1453 = vsel %vm1389, %v1325, 1073741824
    %v1454 = vsel %vm1390, %v1326, 1073741824
    %v1455 = vsel %vm1128, %v1391, 2147483647
    %v1456 = vsel %vm1128, %v1392, 2147483647
    %v1457 = vsel %vm1128, %v1393, 2147483647
    %v1458 = vsel %vm1128, %v1394, 2147483647
    %v1459 = vsel %vm1128, %v1395, 2147483647
    %vm1460 = vcmp.lt.s32.totalorder %v1455, %v1459
    %v1461 = vsel %vm1460, %v1455, %v1459
    %v1462 = vsel %vm1128, %v1396, 2147483647
    %vm1463 = vcmp.lt.s32.totalorder %v1456, %v1462
    %v1464 = vsel %vm1463, %v1456, %v1462
    %v1465 = vsel %vm1128, %v1397, 2147483647
    %vm1466 = vcmp.lt.s32.totalorder %v1457, %v1465
    %v1467 = vsel %vm1466, %v1457, %v1465
    %v1468 = vsel %vm1128, %v1398, 2147483647
    %vm1469 = vcmp.lt.s32.totalorder %v1458, %v1468
    %v1470 = vsel %vm1469, %v1458, %v1468
    %v1471 = vsel %vm1128, %v1399, 2147483647
    %vm1472 = vcmp.lt.s32.totalorder %v1461, %v1471
    %v1473 = vsel %vm1472, %v1461, %v1471
    %v1474 = vsel %vm1128, %v1400, 2147483647
    %vm1475 = vcmp.lt.s32.totalorder %v1464, %v1474
    %v1476 = vsel %vm1475, %v1464, %v1474
    %v1477 = vsel %vm1128, %v1401, 2147483647
    %vm1478 = vcmp.lt.s32.totalorder %v1467, %v1477
    %v1479 = vsel %vm1478, %v1467, %v1477
    %v1480 = vsel %vm1128, %v1402, 2147483647
    %vm1481 = vcmp.lt.s32.totalorder %v1470, %v1480
    %v1482 = vsel %vm1481, %v1470, %v1480
    %v1483 = vsel %vm1128, %v1403, 2147483647
    %vm1484 = vcmp.lt.s32.totalorder %v1473, %v1483
    %v1485 = vsel %vm1484, %v1473, %v1483
    %v1486 = vsel %vm1128, %v1404, 2147483647
    %vm1487 = vcmp.lt.s32.totalorder %v1476, %v1486
    %v1488 = vsel %vm1487, %v1476, %v1486
    %v1489 = vsel %vm1128, %v1405, 2147483647
    %vm1490 = vcmp.lt.s32.totalorder %v1479, %v1489
    %v1491 = vsel %vm1490, %v1479, %v1489
    %v1492 = vsel %vm1128, %v1406, 2147483647
    %vm1493 = vcmp.lt.s32.totalorder %v1482, %v1492
    %v1494 = vsel %vm1493, %v1482, %v1492
    %v1495 = vsel %vm1128, %v1407, 2147483647
    %vm1496 = vcmp.lt.s32.totalorder %v1485, %v1495
    %v1497 = vsel %vm1496, %v1485, %v1495
    %v1498 = vsel %vm1128, %v1408, 2147483647
    %vm1499 = vcmp.lt.s32.totalorder %v1488, %v1498
    %v1500 = vsel %vm1499, %v1488, %v1498
    %v1501 = vsel %vm1128, %v1409, 2147483647
    %vm1502 = vcmp.lt.s32.totalorder %v1491, %v1501
    %v1503 = vsel %vm1502, %v1491, %v1501
    %v1504 = vsel %vm1128, %v1410, 2147483647
    %vm1505 = vcmp.lt.s32.totalorder %v1494, %v1504
    %v1506 = vsel %vm1505, %v1494, %v1504
    %v1507 = vsel %vm1128, %v1411, 2147483647
    %vm1508 = vcmp.lt.s32.totalorder %v1497, %v1507
    %v1509 = vsel %vm1508, %v1497, %v1507
    %v1510 = vsel %vm1128, %v1412, 2147483647
    %vm1511 = vcmp.lt.s32.totalorder %v1500, %v1510
    %v1512 = vsel %vm1511, %v1500, %v1510
    %v1513 = vsel %vm1128, %v1413, 2147483647
    %vm1514 = vcmp.lt.s32.totalorder %v1503, %v1513
    %v1515 = vsel %vm1514, %v1503, %v1513
    %v1516 = vsel %vm1128, %v1414, 2147483647
    %vm1517 = vcmp.lt.s32.totalorder %v1506, %v1516
    %v1518 = vsel %vm1517, %v1506, %v1516
    %v1519 = vsel %vm1128, %v1415, 2147483647
    %vm1520 = vcmp.lt.s32.totalorder %v1509, %v1519
    %v1521 = vsel %vm1520, %v1509, %v1519
    %v1522 = vsel %vm1128, %v1416, 2147483647
    %vm1523 = vcmp.lt.s32.totalorder %v1512, %v1522
    %v1524 = vsel %vm1523, %v1512, %v1522
    %v1525 = vsel %vm1128, %v1417, 2147483647
    %vm1526 = vcmp.lt.s32.totalorder %v1515, %v1525
    %v1527 = vsel %vm1526, %v1515, %v1525
    %v1528 = vsel %vm1128, %v1418, 2147483647
    %vm1529 = vcmp.lt.s32.totalorder %v1518, %v1528
    %v1530 = vsel %vm1529, %v1518, %v1528
    %v1531 = vsel %vm1128, %v1419, 2147483647
    %vm1532 = vcmp.lt.s32.totalorder %v1521, %v1531
    %v1533 = vsel %vm1532, %v1521, %v1531
    %v1534 = vsel %vm1128, %v1420, 2147483647
    %vm1535 = vcmp.lt.s32.totalorder %v1524, %v1534
    %v1536 = vsel %vm1535, %v1524, %v1534
    %v1537 = vsel %vm1128, %v1421, 2147483647
    %vm1538 = vcmp.lt.s32.totalorder %v1527, %v1537
    %v1539 = vsel %vm1538, %v1527, %v1537
    %v1540 = vsel %vm1128, %v1422, 2147483647
    %vm1541 = vcmp.lt.s32.totalorder %v1530, %v1540
    %v1542 = vsel %vm1541, %v1530, %v1540
    %v1543 = vsel %vm1128, %v1423, 2147483647
    %vm1544 = vcmp.lt.s32.totalorder %v1533, %v1543
    %v1545 = vsel %vm1544, %v1533, %v1543
    %v1546 = vsel %vm1128, %v1424, 2147483647
    %vm1547 = vcmp.lt.s32.totalorder %v1536, %v1546
    %v1548 = vsel %vm1547, %v1536, %v1546
    %v1549 = vsel %vm1128, %v1425, 2147483647
    %vm1550 = vcmp.lt.s32.totalorder %v1539, %v1549
    %v1551 = vsel %vm1550, %v1539, %v1549
    %v1552 = vsel %vm1128, %v1426, 2147483647
    %vm1553 = vcmp.lt.s32.totalorder %v1542, %v1552
    %v1554 = vsel %vm1553, %v1542, %v1552
    %v1555 = vsel %vm1128, %v1427, 2147483647
    %vm1556 = vcmp.lt.s32.totalorder %v1545, %v1555
    %v1557 = vsel %vm1556, %v1545, %v1555
    %v1558 = vsel %vm1128, %v1428, 2147483647
    %vm1559 = vcmp.lt.s32.totalorder %v1548, %v1558
    %v1560 = vsel %vm1559, %v1548, %v1558
    %v1561 = vsel %vm1128, %v1429, 2147483647
    %vm1562 = vcmp.lt.s32.totalorder %v1551, %v1561
    %v1563 = vsel %vm1562, %v1551, %v1561
    %v1564 = vsel %vm1128, %v1430, 2147483647
    %vm1565 = vcmp.lt.s32.totalorder %v1554, %v1564
    %v1566 = vsel %vm1565, %v1554, %v1564
    %v1567 = vsel %vm1128, %v1431, 2147483647
    %vm1568 = vcmp.lt.s32.totalorder %v1557, %v1567
    %v1569 = vsel %vm1568, %v1557, %v1567
    %v1570 = vsel %vm1128, %v1432, 2147483647
    %vm1571 = vcmp.lt.s32.totalorder %v1560, %v1570
    %v1572 = vsel %vm1571, %v1560, %v1570
    %v1573 = vsel %vm1128, %v1433, 2147483647
    %vm1574 = vcmp.lt.s32.totalorder %v1563, %v1573
    %v1575 = vsel %vm1574, %v1563, %v1573
    %v1576 = vsel %vm1128, %v1434, 2147483647
    %vm1577 = vcmp.lt.s32.totalorder %v1566, %v1576
    %v1578 = vsel %vm1577, %v1566, %v1576
    %v1579 = vsel %vm1128, %v1435, 2147483647
    %vm1580 = vcmp.lt.s32.totalorder %v1569, %v1579
    %v1581 = vsel %vm1580, %v1569, %v1579
    %v1582 = vsel %vm1128, %v1436, 2147483647
    %vm1583 = vcmp.lt.s32.totalorder %v1572, %v1582
    %v1584 = vsel %vm1583, %v1572, %v1582
    %v1585 = vsel %vm1128, %v1437, 2147483647
    %vm1586 = vcmp.lt.s32.totalorder %v1575, %v1585
    %v1587 = vsel %vm1586, %v1575, %v1585
    %v1588 = vsel %vm1128, %v1438, 2147483647
    %vm1589 = vcmp.lt.s32.totalorder %v1578, %v1588
    %v1590 = vsel %vm1589, %v1578, %v1588
    %v1591 = vsel %vm1128, %v1439, 2147483647
    %vm1592 = vcmp.lt.s32.totalorder %v1581, %v1591
    %v1593 = vsel %vm1592, %v1581, %v1591
    %v1594 = vsel %vm1128, %v1440, 2147483647
    %vm1595 = vcmp.lt.s32.totalorder %v1584, %v1594
    %v1596 = vsel %vm1595, %v1584, %v1594
    %v1597 = vsel %vm1128, %v1441, 2147483647
    %vm1598 = vcmp.lt.s32.totalorder %v1587, %v1597
    %v1599 = vsel %vm1598, %v1587, %v1597
    %v1600 = vsel %vm1128, %v1442, 2147483647
    %vm1601 = vcmp.lt.s32.totalorder %v1590, %v1600
    %v1602 = vsel %vm1601, %v1590, %v1600
    %v1603 = vsel %vm1128, %v1443, 2147483647
    %vm1604 = vcmp.lt.s32.totalorder %v1593, %v1603
    %v1605 = vsel %vm1604, %v1593, %v1603
    %v1606 = vsel %vm1128, %v1444, 2147483647
    %vm1607 = vcmp.lt.s32.totalorder %v1596, %v1606
    %v1608 = vsel %vm1607, %v1596, %v1606
    %v1609 = vsel %vm1128, %v1445, 2147483647
    %vm1610 = vcmp.lt.s32.totalorder %v1599, %v1609
    %v1611 = vsel %vm1610, %v1599, %v1609
    %v1612 = vsel %vm1128, %v1446, 2147483647
    %vm1613 = vcmp.lt.s32.totalorder %v1602, %v1612
    %v1614 = vsel %vm1613, %v1602, %v1612
    %v1615 = vsel %vm1128, %v1447, 2147483647
    %vm1616 = vcmp.lt.s32.totalorder %v1605, %v1615
    %v1617 = vsel %vm1616, %v1605, %v1615
    %v1618 = vsel %vm1128, %v1448, 2147483647
    %vm1619 = vcmp.lt.s32.totalorder %v1608, %v1618
    %v1620 = vsel %vm1619, %v1608, %v1618
    %v1621 = vsel %vm1128, %v1449, 2147483647
    %vm1622 = vcmp.lt.s32.totalorder %v1611, %v1621
    %v1623 = vsel %vm1622, %v1611, %v1621
    %v1624 = vsel %vm1128, %v1450, 2147483647
    %vm1625 = vcmp.lt.s32.totalorder %v1614, %v1624
    %v1626 = vsel %vm1625, %v1614, %v1624
    %v1627 = vsel %vm1128, %v1451, 2147483647
    %vm1628 = vcmp.lt.s32.totalorder %v1617, %v1627
    %v1629 = vsel %vm1628, %v1617, %v1627
    %v1630 = vsel %vm1128, %v1452, 2147483647
    %vm1631 = vcmp.lt.s32.totalorder %v1620, %v1630
    %v1632 = vsel %vm1631, %v1620, %v1630
    %v1633 = vsel %vm1128, %v1453, 2147483647
    %vm1634 = vcmp.lt.s32.totalorder %v1623, %v1633
    %v1635 = vsel %vm1634, %v1623, %v1633
    %v1636 = vsel %vm1128, %v1454, 2147483647
    %vm1637 = vcmp.lt.s32.totalorder %v1626, %v1636
    %v1638 = vsel %vm1637, %v1626, %v1636
    %vm1639 = vcmp.lt.s32.totalorder %v1629, %v1632
    %v1640 = vsel %vm1639, %v1629, %v1632
    %vm1641 = vcmp.lt.s32.totalorder %v1635, %v1638
    %v1642 = vsel %vm1641, %v1635, %v1638
    %vm1643 = vcmp.lt.s32.totalorder %v1640, %v1642
    %v1644 = vsel %vm1643, %v1640, %v1642
    %v1645 = vrot.slane %v1644, 4
    %vm1646 = vcmp.lt.s32.totalorder %v1644, %v1645
    %v1647 = vsel %vm1646, %v1644, %v1645
    %v1648 = vrot.slane %v1647, 2
    %vm1649 = vcmp.lt.s32.totalorder %v1647, %v1648
    %v1650 = vsel %vm1649, %v1647, %v1648
    %v1651 = vrot.slane %v1650, 1
    %vm1652 = vcmp.lt.s32.totalorder %v1650, %v1651
    %v1653 = vsel %vm1652, %v1650, %v1651
    %v1654 = vstv %s86
    %v1655 = vadd.s32 %v1653, %v1654
    %v1656 = vld [vmem:[#allocation2] sm:$0x1]
    %vm1657 = vcmp.gt.f32.partialorder %v1261, %v1656
    %v1658 = vld [vmem:[#allocation3] sm:$0x1]
    %v1659 = vsel %vm1657, %v1655, %v1658
    %vm1660 = vcmask 57344
    %1661 = vst.msk [vmem:[#allocation3] sm:$0x1] %vm1660, %v1659
    %v1662 = vld [vmem:[#allocation2] sm:$0x1]
    %v1663 = vsel %vm1657, %v1261, %v1662
    %1664 = vst.msk [vmem:[#allocation2] sm:$0x1] %vm1660, %v1663
    // Predicated region
    $region18: #{queue_support_set_forward.1} parent=1 // pred_check
      %p1665 = pneg %p62
    $region19: #{queue_support_set_forward.1} parent=1 // pred_check_branch
      %1667 = sbr.rel (%p1665) target = $region21
    $region20: #{queue_support_set_forward.1} parent=1 // pred_region
      %v1668 = vld [vmem:[#allocation2] sm:$0x1]
      %1669 = vst.msk [vmem:[#allocation4] sm:$0x1] %vm1660, %v1668
      %v1670 = vld [vmem:[#allocation3] sm:$0x1]
      %1671 = vst.msk [vmem:[%s4] sm:$0x1] %vm1660, %v1670
    $region21: #{queue_support_set_forward.1} parent=1 // pred_fallthru
      _
    // Predicated region
    $region22: #{queue_support_set_forward.1} parent=1 // pred_check
      _
    $region23: #{queue_support_set_forward.1} parent=1 // pred_check_branch
      %1673 = sbr.rel (0) target = $region25
    $region24: #{queue_support_set_forward.1} parent=1 // pred_region
      %s1675 = ssub.s32 16, 16
      %1676 = vsyncadd [#allocation5], %s1675
      %s1678 = sshll.u32 [#allocation4], 4
      %s1679 = int_to_ptr.vmem [resolvable:$true] %s1678
      %1681 = dma.vmem_to_hbm [thread:$0]  %s1679, 16, %s3, [#allocation5]
    $region25: #{queue_support_set_forward.1} parent=1 // pred_fallthru
      _
    // Predicated region
    $region26: #{queue_support_set_forward.1} parent=1 // pred_check
      _
    $region27: #{queue_support_set_forward.1} parent=1 // pred_check_branch
      %1683 = sbr.rel (0) target = $region29
    $region28: #{queue_support_set_forward.1} parent=1 // pred_region
      _
    $region29: #{queue_support_set_forward.1} parent=1 // pred_fallthru
      _
    // Predicated region
    $region30: #{queue_support_set_forward.1} parent=1 // pred_check
      _
    $region31: #{queue_support_set_forward.1} parent=1 // pred_check_branch
      %1685 = sbr.rel (0) target = $region33
    $region32: #{queue_support_set_forward.1} parent=1 // pred_region
      %1686 = dma.done [#allocation5], 16
    $region33: #{queue_support_set_forward.1} parent=1 // pred_fallthru
      _
    // Predicated region
    $region34: #{queue_support_set_forward.1} parent=1 // pred_check
      _
    $region35: #{queue_support_set_forward.1} parent=1 // pred_check_branch
      %1688 = sbr.rel (0) target = $region37
    $region36: #{queue_support_set_forward.1} parent=1 // pred_region
      _
    $region37: #{queue_support_set_forward.1} parent=1 // pred_fallthru
      _
    %1689 = vsyncpa [#allocation5], 1

</llo_original>
